<compile_context>
chip_gen: v7x
topology: tpu7x:2x2x1
jax: 0.10.0
libtpu: 0.0.40
codegen_flags: <defaults>
</compile_context>

<pallas_src>
import jax
import jax.numpy as jnp
from jax import lax
from jax.experimental import pallas as pl
from jax.experimental.pallas import tpu as pltpu

MIN_NORM = 1e-15           # geoopt clamp_min on norms / denominators
MIN_NORM_SQ = MIN_NORM * MIN_NORM
ARTANH_CLAMP = 1e-7        # geoopt artanh input clamp
BALL_EPS_F32 = 4e-3        # geoopt project() eps for float32
MAXNORM = 1.0 - BALL_EPS_F32


# ---------------------------------------------------------------------------
# Poincare-ball helpers (curvature k = -1), operating on in-kernel f32 values.
# ---------------------------------------------------------------------------
def _artanh(x):
    x = jnp.clip(x, -1.0 + ARTANH_CLAMP, 1.0 - ARTANH_CLAMP)
    return 0.5 * (jnp.log(1.0 + x) - jnp.log(1.0 - x))


def _expmap0_tokens(x):
    # expmap0(x) = tanh(||x||) * x/||x||, then geoopt project() norm clip.
    sq = jnp.sum(x * x, axis=-1, keepdims=True)
    inv = lax.rsqrt(jnp.maximum(sq, MIN_NORM_SQ))      # 1 / max(||x||, MIN)
    nrm = sq * inv                                     # ||x||
    gamma = jnp.minimum(jnp.tanh(nrm), MAXNORM)        # result norm, ball-clipped
    return (gamma * inv) * x


def _mobius_matvec_project(w, x):
    # geoopt mobius_matvec(W, x, project=True) on rows of x: (N,H)->(N,Dp).
    x_sq = jnp.sum(x * x, axis=-1, keepdims=True)
    inv_xn = lax.rsqrt(jnp.maximum(x_sq, MIN_NORM_SQ))
    x_norm = x_sq * inv_xn
    mx = lax.dot_general(x, w, (((1,), (1,)), ((), ())),
                         preferred_element_type=jnp.float32)        # MXU
    mx_sq = jnp.sum(mx * mx, axis=-1, keepdims=True)
    inv_mxn = lax.rsqrt(jnp.maximum(mx_sq, MIN_NORM_SQ))
    mx_norm = mx_sq * inv_mxn
    res = jnp.tanh(mx_norm * inv_xn * _artanh(x_norm)) * (mx * inv_mxn)
    zero_cond = jnp.sum(jnp.abs(mx), axis=-1, keepdims=True) == 0.0
    res = jnp.where(zero_cond, jnp.zeros_like(res), res)
    # project(): clip norm to 1 - eps
    r_sq = jnp.sum(res * res, axis=-1, keepdims=True)
    inv_rn = lax.rsqrt(jnp.maximum(r_sq, MIN_NORM_SQ))
    r_norm = r_sq * inv_rn
    return jnp.where(r_norm > MAXNORM, res * (inv_rn * MAXNORM), res)


def _mobius_add(x, y):
    x2 = jnp.sum(x * x, axis=-1, keepdims=True)
    y2 = jnp.sum(y * y, axis=-1, keepdims=True)
    xy = jnp.sum(x * y, axis=-1, keepdims=True)
    num = (1.0 + 2.0 * xy + y2) * x + (1.0 - x2) * y
    den = 1.0 + 2.0 * xy + x2 * y2
    return num / jnp.maximum(den, MIN_NORM)


def _dist(x, y):
    # d(x, y) = 2 * artanh(|| (-x) (+) y ||)  -> shape (N, 1)
    d = _mobius_add(-x, y)
    dn = jnp.sqrt(jnp.sum(d * d, axis=-1, keepdims=True))
    return 2.0 * _artanh(dn)


# ---------------------------------------------------------------------------
# Pallas kernel.  grid = (batch_tiles, num_neg); negatives axis is a reduction
# into the Z1 scratch accumulator (init at n==0, finalize at n==last).
# ---------------------------------------------------------------------------
def _event_temprel_kernel(enc_ref, m1_ref, m2_ref, nenc_ref, mneg_ref, w_ref,
                          cos_ref, ns_ref, u_sc, d_sc, z_sc):
    n = pl.program_id(1)
    last_n = pl.num_programs(1) - 1
    w = w_ref[...]                                    # (Dp, H) f32, resident

    @pl.when(n == 0)
    def _positive():
        enc = enc_ref[...].astype(jnp.float32)        # (TB, S, H)
        proj = _expmap0_tokens(enc)                   # expmap0 per token (faithful)
        u_raw = jnp.sum(proj * m1_ref[...], axis=1)   # (TB, H)
        v_raw = jnp.sum(proj * m2_ref[...], axis=1)   # (TB, H)
        # fuse both Mobius mat-vecs into one MXU matmul
        uv = _mobius_matvec_project(w, jnp.concatenate([u_raw, v_raw], axis=0))
        tb = u_raw.shape[0]
        u = uv[:tb]                                   # (TB, Dp)
        v = uv[tb:]

        u_sq = jnp.sum(u * u, axis=-1, keepdims=True)
        v_sq = jnp.sum(v * v, axis=-1, keepdims=True)
        diff = u - v
        euclid = jnp.sqrt(jnp.sum(diff * diff, axis=-1, keepdims=True))
        dot_uv = jnp.sum(u * v, axis=-1, keepdims=True)
        sqrt_arg = jnp.maximum(1.0 + u_sq * v_sq - 2.0 * dot_uv, 0.0)
        denom = jnp.sqrt(v_sq) * euclid * jnp.sqrt(sqrt_arg)
        cos = (dot_uv * (1.0 + v_sq) - v_sq * (1.0 + u_sq)) / jnp.maximum(
            denom, MIN_NORM)
        cos_ref[...] = jnp.clip(cos, -1.0, 1.0)       # (TB, 1)

        u_sc[...] = u
        d_sc[...] = _dist(u, v)                       # (TB, 1)
        z_sc[...] = jnp.zeros_like(z_sc)

    # ---- negative n (every grid step) -------------------------------------
    nenc = nenc_ref[...][:, 0].astype(jnp.float32)    # (TB, S, H)
    nproj = _expmap0_tokens(nenc)
    un_raw = jnp.sum(nproj * mneg_ref[...][:, 0], axis=1)   # (TB, H)
    u_n = _mobius_matvec_project(w, un_raw)                 # (TB, Dp)
    z_sc[...] += jnp.exp(-_dist(u_sc[...], u_n))

    @pl.when(n == last_n)
    def _finalize():
        dsq = d_sc[...]
        # ns = -log(exp(-d) / (Z1 + exp(-d))) = d + log(Z1 + exp(-d))
        ns_ref[...] = dsq + jnp.log(z_sc[...] + jnp.exp(-dsq))


# ---------------------------------------------------------------------------
# Wrapper
# ---------------------------------------------------------------------------
def event_temprel_poincare_loss(encoded, mask1, mask2, neg_encoded, mask_u_neg,
                                w_ff_u, *, num_neg: int, alpha: float,
                                batch_tile=None, seq_dtype=jnp.bfloat16):
    """encoded: (B,S,H), mask1/mask2: (B,S,1), neg_encoded: (B*num_neg,S,H),
       mask_u_neg: (B*num_neg,S,1), w_ff_u: (D,H)."""
    b, s, h = encoded.shape
    d = w_ff_u.shape[0]
    dp = ((d + 127) // 128) * 128        # lane-dense projection dim
    # Zero-row padding of W is mathematically exact for all downstream norms,
    # dots and distances (padded output dims are identically zero).
    w_p = jnp.zeros((dp, h), jnp.float32).at[:d, :].set(w_ff_u.astype(jnp.float32))

    # torch .view(B, num_neg, D) => flat row index is b*num_neg + n, so this is
    # a free reshape (no transpose / no HBM copy).
    neg_r = neg_encoded.reshape(b, num_neg, s, h)
    mneg_r = mask_u_neg.reshape(b, num_neg, s, 1)

    tb = batch_tile if batch_tile is not None else min(b, 8)
    assert b % tb == 0, "batch must be divisible by the batch tile"
    nb = b // tb

    grid_spec = pltpu.PrefetchScalarGridSpec(
        num_scalar_prefetch=0,
        grid=(nb, num_neg),
        in_specs=[
            pl.BlockSpec((tb, s, h), lambda i, n: (i, 0, 0)),      # encoded
            pl.BlockSpec((tb, s, 1), lambda i, n: (i, 0, 0)),      # mask1
            pl.BlockSpec((tb, s, 1), lambda i, n: (i, 0, 0)),      # mask2
            pl.BlockSpec((tb, 1, s, h), lambda i, n: (i, n, 0, 0)),  # neg enc
            pl.BlockSpec((tb, 1, s, 1), lambda i, n: (i, n, 0, 0)),  # neg mask
            pl.BlockSpec((dp, h), lambda i, n: (0, 0)),            # W (resident)
        ],
        out_specs=(
            pl.BlockSpec((tb, 1), lambda i, n: (i, 0)),            # cos_angle
            pl.BlockSpec((tb, 1), lambda i, n: (i, 0)),            # ns_loss
        ),
        scratch_shapes=[
            pltpu.VMEM((tb, dp), jnp.float32),   # u (kept across negatives)
            pltpu.VMEM((tb, 1), jnp.float32),    # dist(u, v)
            pltpu.VMEM((tb, 1), jnp.float32),    # Z1 accumulator
        ],
    )

    cos_angle, ns_loss = pl.pallas_call(
        _event_temprel_kernel,
        out_shape=(jax.ShapeDtypeStruct((b, 1), jnp.float32),
                   jax.ShapeDtypeStruct((b, 1), jnp.float32)),
        grid_spec=grid_spec,
        compiler_params=pltpu.CompilerParams(
            dimension_semantics=("parallel", "arbitrary"),
            vmem_limit_bytes=48 * 1024 * 1024),
    )(encoded.astype(seq_dtype),
      mask1.astype(jnp.float32),
      mask2.astype(jnp.float32),
      neg_r.astype(seq_dtype),
      mneg_r.astype(jnp.float32),
      w_p)

    # TODO(synk): th.acos and the final scalar mean stay in plain JAX on a
    # length-B vector; acos lowering inside Mosaic is not guaranteed.
    score = jnp.arccos(cos_angle[:, 0])
    loss = jnp.mean(2.0 * (1.0 - alpha) * score + 2.0 * alpha * ns_loss[:, 0])
    return loss


if __name__ == "__main__":
    # TODO(synk): HF RoBERTa encoder (self.encoder_model) is not translated;
    # deterministic synthetic hidden states stand in for last_hidden_state.
    B, S, H, D = 2, 8, 32, 64
    NUM_NEG = 2
    ALPHA = 0.5

    key = jax.random.PRNGKey(0)
    k_enc, k_neg, k_p1, k_p2, k_pn, k_w = jax.random.split(key, 6)

    encoded = 0.5 * jax.random.normal(k_enc, (B, S, H), jnp.float32)
    neg_encoded = 0.5 * jax.random.normal(k_neg, (B * NUM_NEG, S, H), jnp.float32)

    # one-hot event-token masks (mask1 / mask2 select different tokens)
    pos1 = jax.random.randint(k_p1, (B,), 0, S // 2)
    pos2 = jax.random.randint(k_p2, (B,), S // 2, S)
    posn = jax.random.randint(k_pn, (B * NUM_NEG,), 0, S)
    mask1 = jax.nn.one_hot(pos1, S, dtype=jnp.float32)[:, :, None]
    mask2 = jax.nn.one_hot(pos2, S, dtype=jnp.float32)[:, :, None]
    mask_u_neg = jax.nn.one_hot(posn, S, dtype=jnp.float32)[:, :, None]

    # W_ff_u ~ Uniform(-0.05, 0.05), shape (dim_out, dim_in), deterministic
    w_ff_u = jax.random.uniform(k_w, (D, H), jnp.float32, -0.05, 0.05)

    loss = event_temprel_poincare_loss(
        encoded, mask1, mask2, neg_encoded, mask_u_neg, w_ff_u,
        num_neg=NUM_NEG, alpha=ALPHA)
    jax.block_until_ready(loss)
    print("KERNEL_OK")
</pallas_src>

<mosaic_0001>
module attributes {stable_mosaic.version = 11 : i64} {
  func.func @_event_temprel_kernel(%arg0: i32, %arg1: i32, %arg2: memref<2x8x32xbf16, #tpu.memory_space<vmem>>, %arg3: memref<2x8x1xf32, #tpu.memory_space<vmem>>, %arg4: memref<2x8x1xf32, #tpu.memory_space<vmem>>, %arg5: memref<2x1x8x32xbf16, #tpu.memory_space<vmem>>, %arg6: memref<2x1x8x1xf32, #tpu.memory_space<vmem>>, %arg7: memref<128x32xf32, #tpu.memory_space<vmem>>, %arg8: memref<2x1xf32, #tpu.memory_space<vmem>>, %arg9: memref<2x1xf32, #tpu.memory_space<vmem>>, %arg10: memref<2x128xf32, #tpu.memory_space<vmem>>, %arg11: memref<2x1xf32, #tpu.memory_space<vmem>>, %arg12: memref<2x1xf32, #tpu.memory_space<vmem>>) attributes {dimension_semantics = [#tpu.dimension_semantics<parallel>, #tpu.dimension_semantics<arbitrary>], iteration_bounds = array<i64: 1, 2>, scalar_prefetch = 0 : i64, scratch_operands = 3 : i64, tpu.core_type = #tpu.core_type<tc>, window_params = [{transform_indices = @transform_0, window_bounds = array<i64: 2, 8, 32>}, {transform_indices = @transform_1, window_bounds = array<i64: 2, 8, 1>}, {transform_indices = @transform_2, window_bounds = array<i64: 2, 8, 1>}, {transform_indices = @transform_3, window_bounds = array<i64: 2, 1, 8, 32>}, {transform_indices = @transform_4, window_bounds = array<i64: 2, 1, 8, 1>}, {pipeline_mode = #tpu.pipeline_mode<synchronous>, transform_indices = @transform_5, window_bounds = array<i64: 128, 32>}, {transform_indices = @transform_6, window_bounds = array<i64: 2, 1>}, {transform_indices = @transform_7, window_bounds = array<i64: 2, 1>}]} {
    %c0 = arith.constant 0 : index
    %c0_0 = arith.constant 0 : index
    %0 = vector.load %arg7[%c0, %c0_0] : memref<128x32xf32, #tpu.memory_space<vmem>>, vector<128x32xf32>
    %c0_i32 = arith.constant 0 : i32
    %1 = arith.cmpi eq, %arg1, %c0_i32 : i32
    %2 = arith.extui %1 : i1 to i32
    %c0_i32_1 = arith.constant 0 : i32
    %3 = arith.cmpi ne, %2, %c0_i32_1 : i32
    scf.if %3 {
      %c0_55 = arith.constant 0 : index
      %c0_56 = arith.constant 0 : index
      %c0_57 = arith.constant 0 : index
      %147 = vector.load %arg2[%c0_55, %c0_56, %c0_57] : memref<2x8x32xbf16, #tpu.memory_space<vmem>>, vector<2x8x32xbf16>
      %148 = arith.extf %147 : vector<2x8x32xbf16> to vector<2x8x32xf32>
      %149 = arith.mulf %148, %148 : vector<2x8x32xf32>
      %cst_58 = arith.constant dense<0.000000e+00> : vector<2x8xf32>
      %150 = vector.multi_reduction <add>, %149, %cst_58 [2] : vector<2x8x32xf32> to vector<2x8xf32>
      %151 = vector.shape_cast %150 : vector<2x8xf32> to vector<2x8x1xf32>
      %cst_59 = arith.constant 1.000000e-30 : f32
      %152 = vector.broadcast %cst_59 : f32 to vector<2x8x1xf32>
      %153 = arith.maximumf %151, %152 : vector<2x8x1xf32>
      %154 = math.rsqrt %153 : vector<2x8x1xf32>
      %155 = arith.mulf %151, %154 : vector<2x8x1xf32>
      %156 = math.tanh %155 : vector<2x8x1xf32>
      %cst_60 = arith.constant 0.995999991 : f32
      %157 = vector.broadcast %cst_60 : f32 to vector<2x8x1xf32>
      %158 = arith.minimumf %156, %157 : vector<2x8x1xf32>
      %159 = arith.mulf %158, %154 : vector<2x8x1xf32>
      %160 = vector.broadcast %159 : vector<2x8x1xf32> to vector<2x8x32xf32>
      %161 = arith.mulf %160, %148 : vector<2x8x32xf32>
      %c0_61 = arith.constant 0 : index
      %c0_62 = arith.constant 0 : index
      %c0_63 = arith.constant 0 : index
      %162 = vector.load %arg3[%c0_61, %c0_62, %c0_63] : memref<2x8x1xf32, #tpu.memory_space<vmem>>, vector<2x8x1xf32>
      %163 = vector.broadcast %162 : vector<2x8x1xf32> to vector<2x8x32xf32>
      %164 = arith.mulf %161, %163 : vector<2x8x32xf32>
      %cst_64 = arith.constant dense<0.000000e+00> : vector<2x32xf32>
      %165 = vector.multi_reduction <add>, %164, %cst_64 [1] : vector<2x8x32xf32> to vector<2x32xf32>
      %c0_65 = arith.constant 0 : index
      %c0_66 = arith.constant 0 : index
      %c0_67 = arith.constant 0 : index
      %166 = vector.load %arg4[%c0_65, %c0_66, %c0_67] : memref<2x8x1xf32, #tpu.memory_space<vmem>>, vector<2x8x1xf32>
      %167 = vector.broadcast %166 : vector<2x8x1xf32> to vector<2x8x32xf32>
      %168 = arith.mulf %161, %167 : vector<2x8x32xf32>
      %cst_68 = arith.constant dense<0.000000e+00> : vector<2x32xf32>
      %169 = vector.multi_reduction <add>, %168, %cst_68 [1] : vector<2x8x32xf32> to vector<2x32xf32>
      %170 = tpu.concatenate %165, %169 in 0 : vector<2x32xf32>, vector<2x32xf32> -> vector<4x32xf32>
      %171 = arith.mulf %170, %170 : vector<4x32xf32>
      %cst_69 = arith.constant dense<0.000000e+00> : vector<4xf32>
      %172 = vector.multi_reduction <add>, %171, %cst_69 [1] : vector<4x32xf32> to vector<4xf32>
      %173 = vector.shape_cast %172 : vector<4xf32> to vector<4x1xf32>
      %cst_70 = arith.constant 1.000000e-30 : f32
      %174 = vector.broadcast %cst_70 : f32 to vector<4x1xf32>
      %175 = arith.maximumf %173, %174 : vector<4x1xf32>
      %176 = math.rsqrt %175 : vector<4x1xf32>
      %177 = arith.mulf %173, %176 : vector<4x1xf32>
      %cst_71 = arith.constant dense<0.000000e+00> : vector<4x128xf32>
      %178 = tpu.matmul %170, %0, %cst_71 {dimension_numbers = #tpu.dot_dimension_numbers<[1], [1], [0], [0], [0, 0, 1, 0], [], []>} : vector<4x32xf32>, vector<128x32xf32>, vector<4x128xf32> -> vector<4x128xf32>
      %179 = arith.mulf %178, %178 : vector<4x128xf32>
      %cst_72 = arith.constant dense<0.000000e+00> : vector<4xf32>
      %180 = vector.multi_reduction <add>, %179, %cst_72 [1] : vector<4x128xf32> to vector<4xf32>
      %181 = vector.shape_cast %180 : vector<4xf32> to vector<4x1xf32>
      %cst_73 = arith.constant 1.000000e-30 : f32
      %182 = vector.broadcast %cst_73 : f32 to vector<4x1xf32>
      %183 = arith.maximumf %181, %182 : vector<4x1xf32>
      %184 = math.rsqrt %183 : vector<4x1xf32>
      %185 = arith.mulf %181, %184 : vector<4x1xf32>
      %186 = arith.mulf %185, %176 : vector<4x1xf32>
      %cst_74 = arith.constant -0.99999988 : f32
      %cst_75 = arith.constant 0.99999988 : f32
      %187 = vector.broadcast %cst_74 : f32 to vector<4x1xf32>
      %188 = arith.maximumf %187, %177 : vector<4x1xf32>
      %189 = vector.broadcast %cst_75 : f32 to vector<4x1xf32>
      %190 = arith.minimumf %189, %188 : vector<4x1xf32>
      %cst_76 = arith.constant 1.000000e+00 : f32
      %191 = vector.broadcast %cst_76 : f32 to vector<4x1xf32>
      %192 = arith.addf %191, %190 : vector<4x1xf32>
      %193 = math.log %192 : vector<4x1xf32>
      %cst_77 = arith.constant 1.000000e+00 : f32
      %194 = vector.broadcast %cst_77 : f32 to vector<4x1xf32>
      %195 = arith.subf %194, %190 : vector<4x1xf32>
      %196 = math.log %195 : vector<4x1xf32>
      %197 = arith.subf %193, %196 : vector<4x1xf32>
      %cst_78 = arith.constant 5.000000e-01 : f32
      %198 = vector.broadcast %cst_78 : f32 to vector<4x1xf32>
      %199 = arith.mulf %198, %197 : vector<4x1xf32>
      %200 = arith.mulf %186, %199 : vector<4x1xf32>
      %201 = math.tanh %200 : vector<4x1xf32>
      %202 = vector.broadcast %184 : vector<4x1xf32> to vector<4x128xf32>
      %203 = arith.mulf %178, %202 : vector<4x128xf32>
      %204 = vector.broadcast %201 : vector<4x1xf32> to vector<4x128xf32>
      %205 = arith.mulf %204, %203 : vector<4x128xf32>
      %206 = math.absf %178 : vector<4x128xf32>
      %cst_79 = arith.constant dense<0.000000e+00> : vector<4xf32>
      %207 = vector.multi_reduction <add>, %206, %cst_79 [1] : vector<4x128xf32> to vector<4xf32>
      %208 = vector.shape_cast %207 : vector<4xf32> to vector<4x1xf32>
      %cst_80 = arith.constant 0.000000e+00 : f32
      %209 = vector.broadcast %cst_80 : f32 to vector<4x1xf32>
      %210 = arith.cmpf oeq, %208, %209 : vector<4x1xf32>
      %cst_81 = arith.constant 0.000000e+00 : f32
      %211 = vector.broadcast %cst_81 : f32 to vector<4x128xf32>
      %212 = vector.shape_cast %210 : vector<4x1xi1> to vector<4x1xi1>
      %213 = vector.broadcast %212 : vector<4x1xi1> to vector<4x128xi1>
      %214 = arith.select %213, %211, %205 : vector<4x128xi1>, vector<4x128xf32>
      %215 = arith.mulf %214, %214 : vector<4x128xf32>
      %cst_82 = arith.constant dense<0.000000e+00> : vector<4xf32>
      %216 = vector.multi_reduction <add>, %215, %cst_82 [1] : vector<4x128xf32> to vector<4xf32>
      %217 = vector.shape_cast %216 : vector<4xf32> to vector<4x1xf32>
      %cst_83 = arith.constant 1.000000e-30 : f32
      %218 = vector.broadcast %cst_83 : f32 to vector<4x1xf32>
      %219 = arith.maximumf %217, %218 : vector<4x1xf32>
      %220 = math.rsqrt %219 : vector<4x1xf32>
      %221 = arith.mulf %217, %220 : vector<4x1xf32>
      %cst_84 = arith.constant 0.995999991 : f32
      %222 = vector.broadcast %cst_84 : f32 to vector<4x1xf32>
      %223 = arith.cmpf ogt, %221, %222 : vector<4x1xf32>
      %cst_85 = arith.constant 0.995999991 : f32
      %224 = vector.broadcast %cst_85 : f32 to vector<4x1xf32>
      %225 = arith.mulf %220, %224 : vector<4x1xf32>
      %226 = vector.broadcast %225 : vector<4x1xf32> to vector<4x128xf32>
      %227 = arith.mulf %214, %226 : vector<4x128xf32>
      %228 = vector.shape_cast %223 : vector<4x1xi1> to vector<4x1xi1>
      %229 = vector.broadcast %228 : vector<4x1xi1> to vector<4x128xi1>
      %230 = arith.select %229, %227, %214 : vector<4x128xi1>, vector<4x128xf32>
      %231 = vector.extract_strided_slice %230 {offsets = [0, 0], sizes = [2, 128], strides = [1, 1]} : vector<4x128xf32> to vector<2x128xf32>
      %232 = vector.extract_strided_slice %230 {offsets = [2, 0], sizes = [2, 128], strides = [1, 1]} : vector<4x128xf32> to vector<2x128xf32>
      %233 = arith.mulf %231, %231 : vector<2x128xf32>
      %cst_86 = arith.constant dense<0.000000e+00> : vector<2xf32>
      %234 = vector.multi_reduction <add>, %233, %cst_86 [1] : vector<2x128xf32> to vector<2xf32>
      %235 = vector.shape_cast %234 : vector<2xf32> to vector<2x1xf32>
      %236 = arith.mulf %232, %232 : vector<2x128xf32>
      %cst_87 = arith.constant dense<0.000000e+00> : vector<2xf32>
      %237 = vector.multi_reduction <add>, %236, %cst_87 [1] : vector<2x128xf32> to vector<2xf32>
      %238 = vector.shape_cast %237 : vector<2xf32> to vector<2x1xf32>
      %239 = arith.subf %231, %232 : vector<2x128xf32>
      %240 = arith.mulf %239, %239 : vector<2x128xf32>
      %cst_88 = arith.constant dense<0.000000e+00> : vector<2xf32>
      %241 = vector.multi_reduction <add>, %240, %cst_88 [1] : vector<2x128xf32> to vector<2xf32>
      %242 = vector.shape_cast %241 : vector<2xf32> to vector<2x1xf32>
      %243 = math.sqrt %242 : vector<2x1xf32>
      %244 = arith.mulf %231, %232 : vector<2x128xf32>
      %cst_89 = arith.constant dense<0.000000e+00> : vector<2xf32>
      %245 = vector.multi_reduction <add>, %244, %cst_89 [1] : vector<2x128xf32> to vector<2xf32>
      %246 = vector.shape_cast %245 : vector<2xf32> to vector<2x1xf32>
      %247 = arith.mulf %235, %238 : vector<2x1xf32>
      %cst_90 = arith.constant 1.000000e+00 : f32
      %248 = vector.broadcast %cst_90 : f32 to vector<2x1xf32>
      %249 = arith.addf %248, %247 : vector<2x1xf32>
      %cst_91 = arith.constant 2.000000e+00 : f32
      %250 = vector.broadcast %cst_91 : f32 to vector<2x1xf32>
      %251 = arith.mulf %250, %246 : vector<2x1xf32>
      %252 = arith.subf %249, %251 : vector<2x1xf32>
      %cst_92 = arith.constant 0.000000e+00 : f32
      %253 = vector.broadcast %cst_92 : f32 to vector<2x1xf32>
      %254 = arith.maximumf %252, %253 : vector<2x1xf32>
      %255 = math.sqrt %238 : vector<2x1xf32>
      %256 = arith.mulf %255, %243 : vector<2x1xf32>
      %257 = math.sqrt %254 : vector<2x1xf32>
      %258 = arith.mulf %256, %257 : vector<2x1xf32>
      %cst_93 = arith.constant 1.000000e+00 : f32
      %259 = vector.broadcast %cst_93 : f32 to vector<2x1xf32>
      %260 = arith.addf %259, %238 : vector<2x1xf32>
      %261 = arith.mulf %246, %260 : vector<2x1xf32>
      %cst_94 = arith.constant 1.000000e+00 : f32
      %262 = vector.broadcast %cst_94 : f32 to vector<2x1xf32>
      %263 = arith.addf %262, %235 : vector<2x1xf32>
      %264 = arith.mulf %238, %263 : vector<2x1xf32>
      %265 = arith.subf %261, %264 : vector<2x1xf32>
      %cst_95 = arith.constant 1.000000e-15 : f32
      %266 = vector.broadcast %cst_95 : f32 to vector<2x1xf32>
      %267 = arith.maximumf %258, %266 : vector<2x1xf32>
      %268 = arith.divf %265, %267 : vector<2x1xf32>
      %cst_96 = arith.constant -1.000000e+00 : f32
      %cst_97 = arith.constant 1.000000e+00 : f32
      %269 = vector.broadcast %cst_96 : f32 to vector<2x1xf32>
      %270 = arith.maximumf %269, %268 : vector<2x1xf32>
      %271 = vector.broadcast %cst_97 : f32 to vector<2x1xf32>
      %272 = arith.minimumf %271, %270 : vector<2x1xf32>
      %c0_98 = arith.constant 0 : index
      %c0_99 = arith.constant 0 : index
      %273 = vector.load %arg8[%c0_98, %c0_99] : memref<2x1xf32, #tpu.memory_space<vmem>>, vector<2x1xf32>
      tpu.vector_store %arg8[%c0_98, %c0_99], %272 {strides = array<i32>} : memref<2x1xf32, #tpu.memory_space<vmem>>, vector<2x1xf32>,
      %c0_100 = arith.constant 0 : index
      %c0_101 = arith.constant 0 : index
      %274 = vector.load %arg10[%c0_100, %c0_101] : memref<2x128xf32, #tpu.memory_space<vmem>>, vector<2x128xf32>
      tpu.vector_store %arg10[%c0_100, %c0_101], %231 {strides = array<i32>} : memref<2x128xf32, #tpu.memory_space<vmem>>, vector<2x128xf32>,
      %cst_102 = arith.constant 0.000000e+00 : f32
      %275 = vector.broadcast %cst_102 : f32 to vector<2x128xf32>
      %276 = arith.subf %275, %231 : vector<2x128xf32>
      %277 = arith.mulf %276, %276 : vector<2x128xf32>
      %cst_103 = arith.constant dense<0.000000e+00> : vector<2xf32>
      %278 = vector.multi_reduction <add>, %277, %cst_103 [1] : vector<2x128xf32> to vector<2xf32>
      %279 = vector.shape_cast %278 : vector<2xf32> to vector<2x1xf32>
      %280 = arith.mulf %232, %232 : vector<2x128xf32>
      %cst_104 = arith.constant dense<0.000000e+00> : vector<2xf32>
      %281 = vector.multi_reduction <add>, %280, %cst_104 [1] : vector<2x128xf32> to vector<2xf32>
      %282 = vector.shape_cast %281 : vector<2xf32> to vector<2x1xf32>
      %283 = arith.mulf %276, %232 : vector<2x128xf32>
      %cst_105 = arith.constant dense<0.000000e+00> : vector<2xf32>
      %284 = vector.multi_reduction <add>, %283, %cst_105 [1] : vector<2x128xf32> to vector<2xf32>
      %285 = vector.shape_cast %284 : vector<2xf32> to vector<2x1xf32>
      %cst_106 = arith.constant 2.000000e+00 : f32
      %286 = vector.broadcast %cst_106 : f32 to vector<2x1xf32>
      %287 = arith.mulf %286, %285 : vector<2x1xf32>
      %cst_107 = arith.constant 1.000000e+00 : f32
      %288 = vector.broadcast %cst_107 : f32 to vector<2x1xf32>
      %289 = arith.addf %288, %287 : vector<2x1xf32>
      %290 = arith.addf %289, %282 : vector<2x1xf32>
      %291 = vector.broadcast %290 : vector<2x1xf32> to vector<2x128xf32>
      %292 = arith.mulf %291, %276 : vector<2x128xf32>
      %cst_108 = arith.constant 1.000000e+00 : f32
      %293 = vector.broadcast %cst_108 : f32 to vector<2x1xf32>
      %294 = arith.subf %293, %279 : vector<2x1xf32>
      %295 = vector.broadcast %294 : vector<2x1xf32> to vector<2x128xf32>
      %296 = arith.mulf %295, %232 : vector<2x128xf32>
      %297 = arith.addf %292, %296 : vector<2x128xf32>
      %cst_109 = arith.constant 2.000000e+00 : f32
      %298 = vector.broadcast %cst_109 : f32 to vector<2x1xf32>
      %299 = arith.mulf %298, %285 : vector<2x1xf32>
      %cst_110 = arith.constant 1.000000e+00 : f32
      %300 = vector.broadcast %cst_110 : f32 to vector<2x1xf32>
      %301 = arith.addf %300, %299 : vector<2x1xf32>
      %302 = arith.mulf %279, %282 : vector<2x1xf32>
      %303 = arith.addf %301, %302 : vector<2x1xf32>
      %cst_111 = arith.constant 1.000000e-15 : f32
      %304 = vector.broadcast %cst_111 : f32 to vector<2x1xf32>
      %305 = arith.maximumf %303, %304 : vector<2x1xf32>
      %306 = vector.broadcast %305 : vector<2x1xf32> to vector<2x128xf32>
      %307 = arith.divf %297, %306 : vector<2x128xf32>
      %308 = arith.mulf %307, %307 : vector<2x128xf32>
      %cst_112 = arith.constant dense<0.000000e+00> : vector<2xf32>
      %309 = vector.multi_reduction <add>, %308, %cst_112 [1] : vector<2x128xf32> to vector<2xf32>
      %310 = vector.shape_cast %309 : vector<2xf32> to vector<2x1xf32>
      %311 = math.sqrt %310 : vector<2x1xf32>
      %cst_113 = arith.constant -0.99999988 : f32
      %cst_114 = arith.constant 0.99999988 : f32
      %312 = vector.broadcast %cst_113 : f32 to vector<2x1xf32>
      %313 = arith.maximumf %312, %311 : vector<2x1xf32>
      %314 = vector.broadcast %cst_114 : f32 to vector<2x1xf32>
      %315 = arith.minimumf %314, %313 : vector<2x1xf32>
      %cst_115 = arith.constant 1.000000e+00 : f32
      %316 = vector.broadcast %cst_115 : f32 to vector<2x1xf32>
      %317 = arith.addf %316, %315 : vector<2x1xf32>
      %318 = math.log %317 : vector<2x1xf32>
      %cst_116 = arith.constant 1.000000e+00 : f32
      %319 = vector.broadcast %cst_116 : f32 to vector<2x1xf32>
      %320 = arith.subf %319, %315 : vector<2x1xf32>
      %321 = math.log %320 : vector<2x1xf32>
      %322 = arith.subf %318, %321 : vector<2x1xf32>
      %cst_117 = arith.constant 5.000000e-01 : f32
      %323 = vector.broadcast %cst_117 : f32 to vector<2x1xf32>
      %324 = arith.mulf %323, %322 : vector<2x1xf32>
      %cst_118 = arith.constant 2.000000e+00 : f32
      %325 = vector.broadcast %cst_118 : f32 to vector<2x1xf32>
      %326 = arith.mulf %325, %324 : vector<2x1xf32>
      %c0_119 = arith.constant 0 : index
      %c0_120 = arith.constant 0 : index
      %327 = vector.load %arg11[%c0_119, %c0_120] : memref<2x1xf32, #tpu.memory_space<vmem>>, vector<2x1xf32>
      tpu.vector_store %arg11[%c0_119, %c0_120], %326 {strides = array<i32>} : memref<2x1xf32, #tpu.memory_space<vmem>>, vector<2x1xf32>,
      %cst_121 = arith.constant 0.000000e+00 : f32
      %328 = vector.broadcast %cst_121 : f32 to vector<2x1xf32>
      %c0_122 = arith.constant 0 : index
      %c0_123 = arith.constant 0 : index
      %329 = vector.load %arg12[%c0_122, %c0_123] : memref<2x1xf32, #tpu.memory_space<vmem>>, vector<2x1xf32>
      tpu.vector_store %arg12[%c0_122, %c0_123], %328 {strides = array<i32>} : memref<2x1xf32, #tpu.memory_space<vmem>>, vector<2x1xf32>,
    } else {
    }
    %c0_2 = arith.constant 0 : index
    %c0_3 = arith.constant 0 : index
    %c0_4 = arith.constant 0 : index
    %c0_5 = arith.constant 0 : index
    %4 = vector.load %arg5[%c0_2, %c0_3, %c0_4, %c0_5] : memref<2x1x8x32xbf16, #tpu.memory_space<vmem>>, vector<2x1x8x32xbf16>
    %5 = vector.shape_cast %4 : vector<2x1x8x32xbf16> to vector<2x8x32xbf16>
    %6 = arith.extf %5 : vector<2x8x32xbf16> to vector<2x8x32xf32>
    %7 = arith.mulf %6, %6 : vector<2x8x32xf32>
    %cst = arith.constant dense<0.000000e+00> : vector<2x8xf32>
    %8 = vector.multi_reduction <add>, %7, %cst [2] : vector<2x8x32xf32> to vector<2x8xf32>
    %9 = vector.shape_cast %8 : vector<2x8xf32> to vector<2x8x1xf32>
    %cst_6 = arith.constant 1.000000e-30 : f32
    %10 = vector.broadcast %cst_6 : f32 to vector<2x8x1xf32>
    %11 = arith.maximumf %9, %10 : vector<2x8x1xf32>
    %12 = math.rsqrt %11 : vector<2x8x1xf32>
    %13 = arith.mulf %9, %12 : vector<2x8x1xf32>
    %14 = math.tanh %13 : vector<2x8x1xf32>
    %cst_7 = arith.constant 0.995999991 : f32
    %15 = vector.broadcast %cst_7 : f32 to vector<2x8x1xf32>
    %16 = arith.minimumf %14, %15 : vector<2x8x1xf32>
    %17 = arith.mulf %16, %12 : vector<2x8x1xf32>
    %18 = vector.broadcast %17 : vector<2x8x1xf32> to vector<2x8x32xf32>
    %19 = arith.mulf %18, %6 : vector<2x8x32xf32>
    %c0_8 = arith.constant 0 : index
    %c0_9 = arith.constant 0 : index
    %c0_10 = arith.constant 0 : index
    %c0_11 = arith.constant 0 : index
    %20 = vector.load %arg6[%c0_8, %c0_9, %c0_10, %c0_11] : memref<2x1x8x1xf32, #tpu.memory_space<vmem>>, vector<2x1x8x1xf32>
    %21 = vector.shape_cast %20 : vector<2x1x8x1xf32> to vector<2x8x1xf32>
    %22 = vector.broadcast %21 : vector<2x8x1xf32> to vector<2x8x32xf32>
    %23 = arith.mulf %19, %22 : vector<2x8x32xf32>
    %cst_12 = arith.constant dense<0.000000e+00> : vector<2x32xf32>
    %24 = vector.multi_reduction <add>, %23, %cst_12 [1] : vector<2x8x32xf32> to vector<2x32xf32>
    %25 = arith.mulf %24, %24 : vector<2x32xf32>
    %cst_13 = arith.constant dense<0.000000e+00> : vector<2xf32>
    %26 = vector.multi_reduction <add>, %25, %cst_13 [1] : vector<2x32xf32> to vector<2xf32>
    %27 = vector.shape_cast %26 : vector<2xf32> to vector<2x1xf32>
    %cst_14 = arith.constant 1.000000e-30 : f32
    %28 = vector.broadcast %cst_14 : f32 to vector<2x1xf32>
    %29 = arith.maximumf %27, %28 : vector<2x1xf32>
    %30 = math.rsqrt %29 : vector<2x1xf32>
    %31 = arith.mulf %27, %30 : vector<2x1xf32>
    %cst_15 = arith.constant dense<0.000000e+00> : vector<2x128xf32>
    %32 = tpu.matmul %24, %0, %cst_15 {dimension_numbers = #tpu.dot_dimension_numbers<[1], [1], [0], [0], [0, 0, 1, 0], [], []>} : vector<2x32xf32>, vector<128x32xf32>, vector<2x128xf32> -> vector<2x128xf32>
    %33 = arith.mulf %32, %32 : vector<2x128xf32>
    %cst_16 = arith.constant dense<0.000000e+00> : vector<2xf32>
    %34 = vector.multi_reduction <add>, %33, %cst_16 [1] : vector<2x128xf32> to vector<2xf32>
    %35 = vector.shape_cast %34 : vector<2xf32> to vector<2x1xf32>
    %cst_17 = arith.constant 1.000000e-30 : f32
    %36 = vector.broadcast %cst_17 : f32 to vector<2x1xf32>
    %37 = arith.maximumf %35, %36 : vector<2x1xf32>
    %38 = math.rsqrt %37 : vector<2x1xf32>
    %39 = arith.mulf %35, %38 : vector<2x1xf32>
    %40 = arith.mulf %39, %30 : vector<2x1xf32>
    %cst_18 = arith.constant -0.99999988 : f32
    %cst_19 = arith.constant 0.99999988 : f32
    %41 = vector.broadcast %cst_18 : f32 to vector<2x1xf32>
    %42 = arith.maximumf %41, %31 : vector<2x1xf32>
    %43 = vector.broadcast %cst_19 : f32 to vector<2x1xf32>
    %44 = arith.minimumf %43, %42 : vector<2x1xf32>
    %cst_20 = arith.constant 1.000000e+00 : f32
    %45 = vector.broadcast %cst_20 : f32 to vector<2x1xf32>
    %46 = arith.addf %45, %44 : vector<2x1xf32>
    %47 = math.log %46 : vector<2x1xf32>
    %cst_21 = arith.constant 1.000000e+00 : f32
    %48 = vector.broadcast %cst_21 : f32 to vector<2x1xf32>
    %49 = arith.subf %48, %44 : vector<2x1xf32>
    %50 = math.log %49 : vector<2x1xf32>
    %51 = arith.subf %47, %50 : vector<2x1xf32>
    %cst_22 = arith.constant 5.000000e-01 : f32
    %52 = vector.broadcast %cst_22 : f32 to vector<2x1xf32>
    %53 = arith.mulf %52, %51 : vector<2x1xf32>
    %54 = arith.mulf %40, %53 : vector<2x1xf32>
    %55 = math.tanh %54 : vector<2x1xf32>
    %56 = vector.broadcast %38 : vector<2x1xf32> to vector<2x128xf32>
    %57 = arith.mulf %32, %56 : vector<2x128xf32>
    %58 = vector.broadcast %55 : vector<2x1xf32> to vector<2x128xf32>
    %59 = arith.mulf %58, %57 : vector<2x128xf32>
    %60 = math.absf %32 : vector<2x128xf32>
    %cst_23 = arith.constant dense<0.000000e+00> : vector<2xf32>
    %61 = vector.multi_reduction <add>, %60, %cst_23 [1] : vector<2x128xf32> to vector<2xf32>
    %62 = vector.shape_cast %61 : vector<2xf32> to vector<2x1xf32>
    %cst_24 = arith.constant 0.000000e+00 : f32
    %63 = vector.broadcast %cst_24 : f32 to vector<2x1xf32>
    %64 = arith.cmpf oeq, %62, %63 : vector<2x1xf32>
    %cst_25 = arith.constant 0.000000e+00 : f32
    %65 = vector.broadcast %cst_25 : f32 to vector<2x128xf32>
    %66 = vector.shape_cast %64 : vector<2x1xi1> to vector<2x1xi1>
    %67 = vector.broadcast %66 : vector<2x1xi1> to vector<2x128xi1>
    %68 = arith.select %67, %65, %59 : vector<2x128xi1>, vector<2x128xf32>
    %69 = arith.mulf %68, %68 : vector<2x128xf32>
    %cst_26 = arith.constant dense<0.000000e+00> : vector<2xf32>
    %70 = vector.multi_reduction <add>, %69, %cst_26 [1] : vector<2x128xf32> to vector<2xf32>
    %71 = vector.shape_cast %70 : vector<2xf32> to vector<2x1xf32>
    %cst_27 = arith.constant 1.000000e-30 : f32
    %72 = vector.broadcast %cst_27 : f32 to vector<2x1xf32>
    %73 = arith.maximumf %71, %72 : vector<2x1xf32>
    %74 = math.rsqrt %73 : vector<2x1xf32>
    %75 = arith.mulf %71, %74 : vector<2x1xf32>
    %cst_28 = arith.constant 0.995999991 : f32
    %76 = vector.broadcast %cst_28 : f32 to vector<2x1xf32>
    %77 = arith.cmpf ogt, %75, %76 : vector<2x1xf32>
    %cst_29 = arith.constant 0.995999991 : f32
    %78 = vector.broadcast %cst_29 : f32 to vector<2x1xf32>
    %79 = arith.mulf %74, %78 : vector<2x1xf32>
    %80 = vector.broadcast %79 : vector<2x1xf32> to vector<2x128xf32>
    %81 = arith.mulf %68, %80 : vector<2x128xf32>
    %82 = vector.shape_cast %77 : vector<2x1xi1> to vector<2x1xi1>
    %83 = vector.broadcast %82 : vector<2x1xi1> to vector<2x128xi1>
    %84 = arith.select %83, %81, %68 : vector<2x128xi1>, vector<2x128xf32>
    %c0_30 = arith.constant 0 : index
    %c0_31 = arith.constant 0 : index
    %85 = vector.load %arg12[%c0_30, %c0_31] : memref<2x1xf32, #tpu.memory_space<vmem>>, vector<2x1xf32>
    %c0_32 = arith.constant 0 : index
    %c0_33 = arith.constant 0 : index
    %86 = vector.load %arg10[%c0_32, %c0_33] : memref<2x128xf32, #tpu.memory_space<vmem>>, vector<2x128xf32>
    %cst_34 = arith.constant 0.000000e+00 : f32
    %87 = vector.broadcast %cst_34 : f32 to vector<2x128xf32>
    %88 = arith.subf %87, %86 : vector<2x128xf32>
    %89 = arith.mulf %88, %88 : vector<2x128xf32>
    %cst_35 = arith.constant dense<0.000000e+00> : vector<2xf32>
    %90 = vector.multi_reduction <add>, %89, %cst_35 [1] : vector<2x128xf32> to vector<2xf32>
    %91 = vector.shape_cast %90 : vector<2xf32> to vector<2x1xf32>
    %92 = arith.mulf %84, %84 : vector<2x128xf32>
    %cst_36 = arith.constant dense<0.000000e+00> : vector<2xf32>
    %93 = vector.multi_reduction <add>, %92, %cst_36 [1] : vector<2x128xf32> to vector<2xf32>
    %94 = vector.shape_cast %93 : vector<2xf32> to vector<2x1xf32>
    %95 = arith.mulf %88, %84 : vector<2x128xf32>
    %cst_37 = arith.constant dense<0.000000e+00> : vector<2xf32>
    %96 = vector.multi_reduction <add>, %95, %cst_37 [1] : vector<2x128xf32> to vector<2xf32>
    %97 = vector.shape_cast %96 : vector<2xf32> to vector<2x1xf32>
    %cst_38 = arith.constant 2.000000e+00 : f32
    %98 = vector.broadcast %cst_38 : f32 to vector<2x1xf32>
    %99 = arith.mulf %98, %97 : vector<2x1xf32>
    %cst_39 = arith.constant 1.000000e+00 : f32
    %100 = vector.broadcast %cst_39 : f32 to vector<2x1xf32>
    %101 = arith.addf %100, %99 : vector<2x1xf32>
    %102 = arith.addf %101, %94 : vector<2x1xf32>
    %103 = vector.broadcast %102 : vector<2x1xf32> to vector<2x128xf32>
    %104 = arith.mulf %103, %88 : vector<2x128xf32>
    %cst_40 = arith.constant 1.000000e+00 : f32
    %105 = vector.broadcast %cst_40 : f32 to vector<2x1xf32>
    %106 = arith.subf %105, %91 : vector<2x1xf32>
    %107 = vector.broadcast %106 : vector<2x1xf32> to vector<2x128xf32>
    %108 = arith.mulf %107, %84 : vector<2x128xf32>
    %109 = arith.addf %104, %108 : vector<2x128xf32>
    %cst_41 = arith.constant 2.000000e+00 : f32
    %110 = vector.broadcast %cst_41 : f32 to vector<2x1xf32>
    %111 = arith.mulf %110, %97 : vector<2x1xf32>
    %cst_42 = arith.constant 1.000000e+00 : f32
    %112 = vector.broadcast %cst_42 : f32 to vector<2x1xf32>
    %113 = arith.addf %112, %111 : vector<2x1xf32>
    %114 = arith.mulf %91, %94 : vector<2x1xf32>
    %115 = arith.addf %113, %114 : vector<2x1xf32>
    %cst_43 = arith.constant 1.000000e-15 : f32
    %116 = vector.broadcast %cst_43 : f32 to vector<2x1xf32>
    %117 = arith.maximumf %115, %116 : vector<2x1xf32>
    %118 = vector.broadcast %117 : vector<2x1xf32> to vector<2x128xf32>
    %119 = arith.divf %109, %118 : vector<2x128xf32>
    %120 = arith.mulf %119, %119 : vector<2x128xf32>
    %cst_44 = arith.constant dense<0.000000e+00> : vector<2xf32>
    %121 = vector.multi_reduction <add>, %120, %cst_44 [1] : vector<2x128xf32> to vector<2xf32>
    %122 = vector.shape_cast %121 : vector<2xf32> to vector<2x1xf32>
    %123 = math.sqrt %122 : vector<2x1xf32>
    %cst_45 = arith.constant -0.99999988 : f32
    %cst_46 = arith.constant 0.99999988 : f32
    %124 = vector.broadcast %cst_45 : f32 to vector<2x1xf32>
    %125 = arith.maximumf %124, %123 : vector<2x1xf32>
    %126 = vector.broadcast %cst_46 : f32 to vector<2x1xf32>
    %127 = arith.minimumf %126, %125 : vector<2x1xf32>
    %cst_47 = arith.constant 1.000000e+00 : f32
    %128 = vector.broadcast %cst_47 : f32 to vector<2x1xf32>
    %129 = arith.addf %128, %127 : vector<2x1xf32>
    %130 = math.log %129 : vector<2x1xf32>
    %cst_48 = arith.constant 1.000000e+00 : f32
    %131 = vector.broadcast %cst_48 : f32 to vector<2x1xf32>
    %132 = arith.subf %131, %127 : vector<2x1xf32>
    %133 = math.log %132 : vector<2x1xf32>
    %134 = arith.subf %130, %133 : vector<2x1xf32>
    %cst_49 = arith.constant 5.000000e-01 : f32
    %135 = vector.broadcast %cst_49 : f32 to vector<2x1xf32>
    %136 = arith.mulf %135, %134 : vector<2x1xf32>
    %cst_50 = arith.constant 2.000000e+00 : f32
    %137 = vector.broadcast %cst_50 : f32 to vector<2x1xf32>
    %138 = arith.mulf %137, %136 : vector<2x1xf32>
    %cst_51 = arith.constant 0.000000e+00 : f32
    %139 = vector.broadcast %cst_51 : f32 to vector<2x1xf32>
    %140 = arith.subf %139, %138 : vector<2x1xf32>
    %141 = math.exp %140 : vector<2x1xf32>
    %142 = arith.addf %85, %141 : vector<2x1xf32>
    %c0_52 = arith.constant 0 : index
    %c0_53 = arith.constant 0 : index
    %143 = vector.load %arg12[%c0_52, %c0_53] : memref<2x1xf32, #tpu.memory_space<vmem>>, vector<2x1xf32>
    tpu.vector_store %arg12[%c0_52, %c0_53], %142 {strides = array<i32>} : memref<2x1xf32, #tpu.memory_space<vmem>>, vector<2x1xf32>,
    %c1_i32 = arith.constant 1 : i32
    %144 = arith.cmpi eq, %arg1, %c1_i32 : i32
    %145 = arith.extui %144 : i1 to i32
    %c0_i32_54 = arith.constant 0 : i32
    %146 = arith.cmpi ne, %145, %c0_i32_54 : i32
    scf.if %146 {
      %c0_55 = arith.constant 0 : index
      %c0_56 = arith.constant 0 : index
      %147 = vector.load %arg11[%c0_55, %c0_56] : memref<2x1xf32, #tpu.memory_space<vmem>>, vector<2x1xf32>
      %c0_57 = arith.constant 0 : index
      %c0_58 = arith.constant 0 : index
      %148 = vector.load %arg12[%c0_57, %c0_58] : memref<2x1xf32, #tpu.memory_space<vmem>>, vector<2x1xf32>
      %cst_59 = arith.constant 0.000000e+00 : f32
      %149 = vector.broadcast %cst_59 : f32 to vector<2x1xf32>
      %150 = arith.subf %149, %147 : vector<2x1xf32>
      %151 = math.exp %150 : vector<2x1xf32>
      %152 = arith.addf %148, %151 : vector<2x1xf32>
      %153 = math.log %152 : vector<2x1xf32>
      %154 = arith.addf %147, %153 : vector<2x1xf32>
      %c0_60 = arith.constant 0 : index
      %c0_61 = arith.constant 0 : index
      %155 = vector.load %arg9[%c0_60, %c0_61] : memref<2x1xf32, #tpu.memory_space<vmem>>, vector<2x1xf32>
      tpu.vector_store %arg9[%c0_60, %c0_61], %154 {strides = array<i32>} : memref<2x1xf32, #tpu.memory_space<vmem>>, vector<2x1xf32>,
    } else {
    }
    return
  }
  func.func @transform_0(%arg0: i32, %arg1: i32) -> (i32, i32, i32) {
    %c0_i32 = arith.constant 0 : i32
    %c0_i32_0 = arith.constant 0 : i32
    %c0_i32_1 = arith.constant 0 : i32
    return %arg0, %c0_i32, %c0_i32_0 : i32, i32, i32
  }
  func.func @transform_1(%arg0: i32, %arg1: i32) -> (i32, i32, i32) {
    %c0_i32 = arith.constant 0 : i32
    %c0_i32_0 = arith.constant 0 : i32
    %c0_i32_1 = arith.constant 0 : i32
    return %arg0, %c0_i32, %c0_i32_0 : i32, i32, i32
  }
  func.func @transform_2(%arg0: i32, %arg1: i32) -> (i32, i32, i32) {
    %c0_i32 = arith.constant 0 : i32
    %c0_i32_0 = arith.constant 0 : i32
    %c0_i32_1 = arith.constant 0 : i32
    return %arg0, %c0_i32, %c0_i32_0 : i32, i32, i32
  }
  func.func @transform_3(%arg0: i32, %arg1: i32) -> (i32, i32, i32, i32) {
    %c0_i32 = arith.constant 0 : i32
    %c0_i32_0 = arith.constant 0 : i32
    %c0_i32_1 = arith.constant 0 : i32
    return %arg0, %arg1, %c0_i32, %c0_i32_0 : i32, i32, i32, i32
  }
  func.func @transform_4(%arg0: i32, %arg1: i32) -> (i32, i32, i32, i32) {
    %c0_i32 = arith.constant 0 : i32
    %c0_i32_0 = arith.constant 0 : i32
    %c0_i32_1 = arith.constant 0 : i32
    return %arg0, %arg1, %c0_i32, %c0_i32_0 : i32, i32, i32, i32
  }
  func.func @transform_5(%arg0: i32, %arg1: i32) -> (i32, i32) {
    %c0_i32 = arith.constant 0 : i32
    %c0_i32_0 = arith.constant 0 : i32
    %c0_i32_1 = arith.constant 0 : i32
    return %c0_i32, %c0_i32_0 : i32, i32
  }
  func.func @transform_6(%arg0: i32, %arg1: i32) -> (i32, i32) {
    %c0_i32 = arith.constant 0 : i32
    %c0_i32_0 = arith.constant 0 : i32
    return %arg0, %c0_i32 : i32, i32
  }
  func.func @transform_7(%arg0: i32, %arg1: i32) -> (i32, i32) {
    %c0_i32 = arith.constant 0 : i32
    %c0_i32_0 = arith.constant 0 : i32
    return %arg0, %c0_i32 : i32, i32
  }
}

</mosaic_0001>

<llo_original>
// kernel: tpu_custom_call.1
$region0: #{tpu_custom_call.1}
  #allocation0 [shape = 'u32[]', space=smem, size = 0x4, offset = 0x4, fixed_abs, tag = 'smem constant byte address 0x4 - core index']
  #allocation1 [shape = 'u32[144,128]{1,0:T(1,128)}', space=vmem, size = 0x12000, scoped, tag = 'internal scratch']
  #allocation2 [shape = 'f32[2,128]{1,0:T(2,128)}', space=vmem, size = 0x400, scoped, tag = 'scratch operand']
  #allocation3 [shape = 'f32[2,1]{1,0:T(2,128)}', space=vmem, size = 0x400, scoped, tag = 'scratch operand']
  #allocation4 [shape = 'f32[2,1]{1,0:T(2,128)}', space=vmem, size = 0x400, scoped, tag = 'scratch operand']
  %s0 = inlined_call_operand.vmem [shape: bf16[2,8,32], index: 0, kind: input, shape index: {}]
  %s1 = inlined_call_operand.vmem [shape: f32[2,8,1], index: 1, kind: input, shape index: {}]
  %s2 = inlined_call_operand.vmem [shape: f32[2,8,1], index: 2, kind: input, shape index: {}]
  %s3 = inlined_call_operand.vmem [shape: bf16[2,2,8,32], index: 3, kind: input, shape index: {}]
  %s4 = inlined_call_operand.vmem [shape: f32[2,2,8,1], index: 4, kind: input, shape index: {}]
  %s5 = inlined_call_operand.vmem [shape: f32[128,32], index: 5, kind: input, shape index: {}]
  %s6 = inlined_call_operand.vmem [shape: f32[2,1], index: 6, kind: output, shape index: {0}]
  %s7 = inlined_call_operand.vmem [shape: f32[2,1], index: 7, kind: output, shape index: {1}]
  %8 = xla_tuple %s6, %s7
  %s9 = sld [smem:[#allocation0]]
  $region152: #{tpu_custom_call.1} parent=0
    _
  %s11 = ssub.s32 1, %s9
  %s12 = scalar_select 0, %s11, %s9
  $region1: #{tpu_custom_call.1} parent=0
    #allocation5 [shape = 'u8[8192]{0}', space=vmem, size = 0x2000, scoped, tag = 'input window, operand 3']
    #allocation6 [shape = 'u8[16384]{0}', space=vmem, size = 0x4000, scoped, tag = 'input window, operand 4']
    loop: start=0, step=1, limit=4
    $region2: #{tpu_custom_call.1} parent=1 // loop_pre_header
      _
    $region3: #{tpu_custom_call.1} parent=1 // loop_header
      %s14 = sphi 0, %s18
      %p15 = scmp.ge.s32.totalorder %s14, 4
      %s21 = sphi 0, %s33
      %s22 = sphi 0, %s29
      %s23 = sphi 0, %s21
      %s24 = sphi 0, %s22
      %s25 = sphi 0, %s23
      %s26 = sphi 0, %s24
      %s36 = sphi 0, %s38
      %s39 = sphi 0, %s36
      %s40 = sphi 0, %s39
      %s56 = sphi 0, %s40
      %s62 = sphi 0, %s64
      %s65 = sphi 0, %s62
      %s66 = sphi 0, %s65
      %s82 = sphi 0, %s66
      %s88 = sphi 0, %s90
      %s91 = sphi 0, %s88
      %s92 = sphi 0, %s91
      %s108 = sphi 0, %s92
      %s116 = sphi 0, %s118
      %s119 = sphi 0, %s116
      %s120 = sphi 0, %s119
      %s136 = sphi 0, %s120
      %s144 = sphi 0, %s146
      %s147 = sphi 0, %s144
      %s148 = sphi 0, %s147
      %s164 = sphi 0, %s148
      %s168 = sphi 0, %s168
      %s170 = sphi 0, %s168
      %s171 = sphi 0, %s170
      %s185 = sphi 0, %s171
      %s191 = sphi 0, %s193
      %s194 = sphi 0, %s191
      %s195 = sphi 0, %s194
      %s211 = sphi 0, %s195
      %s217 = sphi 0, %s219
      %s220 = sphi 0, %s217
      %s221 = sphi 0, %s220
      %s237 = sphi 0, %s221
    $region4: #{tpu_custom_call.1} parent=1 // loop_header_branch
      %17 = sbr.rel (%p15) target = $region8
    $region5: #{tpu_custom_call.1} parent=1 // loop_body
      %s19 = ssub.s32 %s14, 1
      %s20 = ssub.s32 %s14, 2
      %s27 = sadd.s32 1, %s22
      %p28 = scmp.ge.s32.totalorder %s27, 2
      %s29 = scalar_select %p28, 0, %s27
      %s30 = sadd.s32 1, %s21
      %s31 = scalar_select %p28, %s30, %s21
      %p32 = scmp.ge.s32.totalorder %s31, 1
      %s33 = scalar_select %p32, 0, %s31
      %s34 = ssub.s32 %s21, %s33
      %p35 = scmp.eq.s32.totalorder %s34, 0
      %s37 = sadd.s32 %s36, 1
      %s38 = scalar_select %p35, %s36, %s37
      %p41 = pneg %p35
      %p42 = scmp.eq.s32.totalorder %s14, 1
      %p43 = por %p41, %p42
      %p44 = scmp.ne.s32.totalorder %s36, %s39
      %p45 = scmp.eq.s32.totalorder %s14, 0
      %p46 = por %p44, %p45
      %p47 = scmp.ne.s32.totalorder %s36, %s39
      %p48 = scmp.eq.s32.totalorder %s19, 1
      %p49 = por %p47, %p48
      %p50 = scmp.ne.s32.totalorder %s39, %s40
      %p51 = scmp.eq.s32.totalorder %s19, 0
      %p52 = por %p50, %p51
      %p53 = scmp.ne.s32.totalorder %s39, %s40
      %p54 = scmp.eq.s32.totalorder %s20, 1
      %p55 = por %p53, %p54
      %p57 = scmp.ne.s32.totalorder %s40, %s56
      %p58 = scmp.eq.s32.totalorder %s20, 0
      %p59 = por %p57, %p58
      %s60 = ssub.s32 %s21, %s33
      %p61 = scmp.eq.s32.totalorder %s60, 0
      %s63 = sadd.s32 %s62, 1
      %s64 = scalar_select %p61, %s62, %s63
      %p67 = pneg %p61
      %p68 = scmp.eq.s32.totalorder %s14, 1
      %p69 = por %p67, %p68
      %p70 = scmp.ne.s32.totalorder %s62, %s65
      %p71 = scmp.eq.s32.totalorder %s14, 0
      %p72 = por %p70, %p71
      %p73 = scmp.ne.s32.totalorder %s62, %s65
      %p74 = scmp.eq.s32.totalorder %s19, 1
      %p75 = por %p73, %p74
      %p76 = scmp.ne.s32.totalorder %s65, %s66
      %p77 = scmp.eq.s32.totalorder %s19, 0
      %p78 = por %p76, %p77
      %p79 = scmp.ne.s32.totalorder %s65, %s66
      %p80 = scmp.eq.s32.totalorder %s20, 1
      %p81 = por %p79, %p80
      %p83 = scmp.ne.s32.totalorder %s66, %s82
      %p84 = scmp.eq.s32.totalorder %s20, 0
      %p85 = por %p83, %p84
      %s86 = ssub.s32 %s21, %s33
      %p87 = scmp.eq.s32.totalorder %s86, 0
      %s89 = sadd.s32 %s88, 1
      %s90 = scalar_select %p87, %s88, %s89
      %p93 = pneg %p87
      %p94 = scmp.eq.s32.totalorder %s14, 1
      %p95 = por %p93, %p94
      %p96 = scmp.ne.s32.totalorder %s88, %s91
      %p97 = scmp.eq.s32.totalorder %s14, 0
      %p98 = por %p96, %p97
      %p99 = scmp.ne.s32.totalorder %s88, %s91
      %p100 = scmp.eq.s32.totalorder %s19, 1
      %p101 = por %p99, %p100
      %p102 = scmp.ne.s32.totalorder %s91, %s92
      %p103 = scmp.eq.s32.totalorder %s19, 0
      %p104 = por %p102, %p103
      %p105 = scmp.ne.s32.totalorder %s91, %s92
      %p106 = scmp.eq.s32.totalorder %s20, 1
      %p107 = por %p105, %p106
      %p109 = scmp.ne.s32.totalorder %s92, %s108
      %p110 = scmp.eq.s32.totalorder %s20, 0
      %p111 = por %p109, %p110
      %s112 = ssub.s32 %s21, %s33
      %s113 = ssub.s32 %s22, %s29
      %s114 = sor.u32 %s112, %s113
      %p115 = scmp.eq.s32.totalorder %s114, 0
      %s117 = sadd.s32 %s116, 1
      %s118 = scalar_select %p115, %s116, %s117
      %p121 = pneg %p115
      %p122 = scmp.eq.s32.totalorder %s14, 1
      %p123 = por %p121, %p122
      %p124 = scmp.ne.s32.totalorder %s116, %s119
      %p125 = scmp.eq.s32.totalorder %s14, 0
      %p126 = por %p124, %p125
      %p127 = scmp.ne.s32.totalorder %s116, %s119
      %p128 = scmp.eq.s32.totalorder %s19, 1
      %p129 = por %p127, %p128
      %p130 = scmp.ne.s32.totalorder %s119, %s120
      %p131 = scmp.eq.s32.totalorder %s19, 0
      %p132 = por %p130, %p131
      %p133 = scmp.ne.s32.totalorder %s119, %s120
      %p134 = scmp.eq.s32.totalorder %s20, 1
      %p135 = por %p133, %p134
      %p137 = scmp.ne.s32.totalorder %s120, %s136
      %p138 = scmp.eq.s32.totalorder %s20, 0
      %p139 = por %p137, %p138
      %s140 = ssub.s32 %s21, %s33
      %s141 = ssub.s32 %s22, %s29
      %s142 = sor.u32 %s140, %s141
      %p143 = scmp.eq.s32.totalorder %s142, 0
      %s145 = sadd.s32 %s144, 1
      %s146 = scalar_select %p143, %s144, %s145
      %p149 = pneg %p143
      %p150 = scmp.eq.s32.totalorder %s14, 1
      %p151 = por %p149, %p150
      %p152 = scmp.ne.s32.totalorder %s144, %s147
      %p153 = scmp.eq.s32.totalorder %s14, 0
      %p154 = por %p152, %p153
      %p155 = scmp.ne.s32.totalorder %s144, %s147
      %p156 = scmp.eq.s32.totalorder %s19, 1
      %p157 = por %p155, %p156
      %p158 = scmp.ne.s32.totalorder %s147, %s148
      %p159 = scmp.eq.s32.totalorder %s19, 0
      %p160 = por %p158, %p159
      %p161 = scmp.ne.s32.totalorder %s147, %s148
      %p162 = scmp.eq.s32.totalorder %s20, 1
      %p163 = por %p161, %p162
      %p165 = scmp.ne.s32.totalorder %s148, %s164
      %p166 = scmp.eq.s32.totalorder %s20, 0
      %p167 = por %p165, %p166
      %s169 = sadd.s32 %s168, 1
      %p172 = scmp.eq.s32.totalorder %s14, 1
      %p173 = scmp.ne.s32.totalorder %s168, %s170
      %p174 = scmp.eq.s32.totalorder %s14, 0
      %p175 = por %p173, %p174
      %p176 = scmp.ne.s32.totalorder %s168, %s170
      %p177 = scmp.eq.s32.totalorder %s19, 1
      %p178 = por %p176, %p177
      %p179 = scmp.ne.s32.totalorder %s170, %s171
      %p180 = scmp.eq.s32.totalorder %s19, 0
      %p181 = por %p179, %p180
      %p182 = scmp.ne.s32.totalorder %s170, %s171
      %p183 = scmp.eq.s32.totalorder %s20, 1
      %p184 = por %p182, %p183
      %p186 = scmp.ne.s32.totalorder %s171, %s185
      %p187 = scmp.eq.s32.totalorder %s20, 0
      %p188 = por %p186, %p187
      %s189 = ssub.s32 %s21, %s33
      %p190 = scmp.eq.s32.totalorder %s189, 0
      %s192 = sadd.s32 %s191, 1
      %s193 = scalar_select %p190, %s191, %s192
      %p196 = pneg %p190
      %p197 = scmp.eq.s32.totalorder %s14, 1
      %p198 = por %p196, %p197
      %p199 = scmp.ne.s32.totalorder %s191, %s194
      %p200 = scmp.eq.s32.totalorder %s14, 0
      %p201 = por %p199, %p200
      %p202 = scmp.ne.s32.totalorder %s191, %s194
      %p203 = scmp.eq.s32.totalorder %s19, 1
      %p204 = por %p202, %p203
      %p205 = scmp.ne.s32.totalorder %s194, %s195
      %p206 = scmp.eq.s32.totalorder %s19, 0
      %p207 = por %p205, %p206
      %p208 = scmp.ne.s32.totalorder %s194, %s195
      %p209 = scmp.eq.s32.totalorder %s20, 1
      %p210 = por %p208, %p209
      %p212 = scmp.ne.s32.totalorder %s195, %s211
      %p213 = scmp.eq.s32.totalorder %s20, 0
      %p214 = por %p212, %p213
      %s215 = ssub.s32 %s21, %s33
      %p216 = scmp.eq.s32.totalorder %s215, 0
      %s218 = sadd.s32 %s217, 1
      %s219 = scalar_select %p216, %s217, %s218
      %p222 = pneg %p216
      %p223 = scmp.eq.s32.totalorder %s14, 1
      %p224 = por %p222, %p223
      %p225 = scmp.ne.s32.totalorder %s217, %s220
      %p226 = scmp.eq.s32.totalorder %s14, 0
      %p227 = por %p225, %p226
      %p228 = scmp.ne.s32.totalorder %s217, %s220
      %p229 = scmp.eq.s32.totalorder %s19, 1
      %p230 = por %p228, %p229
      %p231 = scmp.ne.s32.totalorder %s220, %s221
      %p232 = scmp.eq.s32.totalorder %s19, 0
      %p233 = por %p231, %p232
      %p234 = scmp.ne.s32.totalorder %s220, %s221
      %p235 = scmp.eq.s32.totalorder %s20, 1
      %p236 = por %p234, %p235
      %p238 = scmp.ne.s32.totalorder %s221, %s237
      %p239 = scmp.eq.s32.totalorder %s20, 0
      %p240 = por %p238, %p239
      %p241 = scmp.le.s32.totalorder 1, %s14
      %p242 = scmp.lt.s32.totalorder %s14, 3
      %p243 = pnand %p241, %p242
      %p244 = pneg %p243
      // Predicated region
      $region9: #{tpu_custom_call.1} parent=5 // pred_check
        _
      $region10: #{tpu_custom_call.1} parent=5 // pred_check_branch
        %246 = sbr.rel (%p243) target = $region12
      $region11: #{tpu_custom_call.1} parent=5 // pred_region
        %s247 = ssub.s32 %s14, 1
        // Predicated region
        $region13: #{tpu_custom_call.1} parent=11 // pred_check
          %p248 = pneg %p52
        $region14: #{tpu_custom_call.1} parent=11 // pred_check_branch
          %250 = sbr.rel (%p248) target = $region16
        $region15: #{tpu_custom_call.1} parent=11 // pred_region
          %s251 = smul.u32 2, %s23
          %p252 = scmp.lt.s32.totalorder %s251, 1
          %s253 = scalar_select %p252, %s251, 1
          %s254 = smul.addr %s253, 4
          %s255 = scalar_lea.vmem %s0, %s254
          %s256 = smul.u32 2, %s23
        $region16: #{tpu_custom_call.1} parent=11 // pred_fallthru
          _
        // Predicated region
        $region17: #{tpu_custom_call.1} parent=11 // pred_check
          %p257 = pneg %p78
        $region18: #{tpu_custom_call.1} parent=11 // pred_check_branch
          %259 = sbr.rel (%p257) target = $region20
        $region19: #{tpu_custom_call.1} parent=11 // pred_region
          %s260 = smul.u32 2, %s23
          %p261 = scmp.lt.s32.totalorder %s260, 1
          %s262 = scalar_select %p261, %s260, 1
          %s263 = smul.addr %s262, 8
          %s264 = scalar_lea.vmem %s1, %s263
          %s265 = smul.u32 2, %s23
        $region20: #{tpu_custom_call.1} parent=11 // pred_fallthru
          _
        // Predicated region
        $region21: #{tpu_custom_call.1} parent=11 // pred_check
          %p266 = pneg %p104
        $region22: #{tpu_custom_call.1} parent=11 // pred_check_branch
          %268 = sbr.rel (%p266) target = $region24
        $region23: #{tpu_custom_call.1} parent=11 // pred_region
          %s269 = smul.u32 2, %s23
          %p270 = scmp.lt.s32.totalorder %s269, 1
          %s271 = scalar_select %p270, %s269, 1
          %s272 = smul.addr %s271, 8
          %s273 = scalar_lea.vmem %s2, %s272
          %s274 = smul.u32 2, %s23
        $region24: #{tpu_custom_call.1} parent=11 // pred_fallthru
          _
        // Predicated region
        $region25: #{tpu_custom_call.1} parent=11 // pred_check
          %p275 = pneg %p181
        $region26: #{tpu_custom_call.1} parent=11 // pred_check_branch
          %277 = sbr.rel (%p275) target = $region28
        $region27: #{tpu_custom_call.1} parent=11 // pred_region
          _
        $region28: #{tpu_custom_call.1} parent=11 // pred_fallthru
          _
      $region12: #{tpu_custom_call.1} parent=5 // pred_fallthru
        _
      %p278 = scmp.lt.s32.totalorder %s14, 2
      // Predicated region
      $region29: #{tpu_custom_call.1} parent=5 // pred_check
        %p279 = pneg %p278
      $region30: #{tpu_custom_call.1} parent=5 // pred_check_branch
        %281 = sbr.rel (%p279) target = $region32
      $region31: #{tpu_custom_call.1} parent=5 // pred_region
        // Predicated region
        $region33: #{tpu_custom_call.1} parent=31 // pred_check
          %p282 = pneg %p126
        $region34: #{tpu_custom_call.1} parent=31 // pred_check_branch
          %284 = sbr.rel (%p282) target = $region36
        $region35: #{tpu_custom_call.1} parent=31 // pred_region
          %s285 = sand.u32 %s116, 1
          %s286 = sand.u32 %s116, 1
          %s287 = smul.addr %s286, 8
          %s288 = scalar_lea.vmem [#allocation5], %s287
          %s289 = smul.u32 2, %s21
          %s290 = smul.addr %s289, 2
          %s291 = sadd.s32 %s22, %s290
          %s292 = smul.addr %s291, 4
          %s293 = scalar_lea.vmem %s3, %s292
          // Predicated region
          $region37: #{tpu_custom_call.1} parent=35 // pred_check
            _
          $region38: #{tpu_custom_call.1} parent=35 // pred_check_branch
            %295 = sbr.rel (0) target = $region40
          $region39: #{tpu_custom_call.1} parent=35 // pred_region
            // Predicated region
            $region41: #{tpu_custom_call.1} parent=39 // pred_check
              _
            $region42: #{tpu_custom_call.1} parent=39 // pred_check_branch
              %297 = sbr.rel target = $region44
            $region43: #{tpu_custom_call.1} parent=39 // pred_region
              // Predicated region
              $region56: #{tpu_custom_call.1} parent=43 // pred_check
                _
              $region57: #{tpu_custom_call.1} parent=43 // pred_check_branch
                %314 = sbr.rel (0) target = $region59
              $region58: #{tpu_custom_call.1} parent=43 // pred_region
                loop: start=0, step=1, limit=1
                $region60: #{tpu_custom_call.1} parent=58 // loop_pre_header
                  _
                $region61: #{tpu_custom_call.1} parent=58 // loop_header
                  %s316 = sphi 0, %s320
                  %p317 = scmp.ge.s32.totalorder %s316, 1
                  %s321 = sphi %s293, %s293
                  %s322 = sphi %s288, %s288
                $region62: #{tpu_custom_call.1} parent=58 // loop_header_branch
                  %319 = sbr.rel (%p317) target = $region66
                $region63: #{tpu_custom_call.1} parent=58 // loop_body
                  _
                $region64: #{tpu_custom_call.1} parent=58 // loop_footer
                  %s320 = sadd.s32 1, %s316
                $region65: #{tpu_custom_call.1} parent=58 // loop_footer_branch
                  %315 = sbr.rel target = $region61
                $region66: #{tpu_custom_call.1} parent=58 // loop_exit
                  _
                loop: start=0, step=1, limit=1
                $region67: #{tpu_custom_call.1} parent=58 // loop_pre_header
                  _
                $region68: #{tpu_custom_call.1} parent=58 // loop_header
                  %s325 = sphi 0, %s329
                  %p326 = scmp.ge.s32.totalorder %s325, 1
                  %s330 = sphi %s293, %s293
                  %s331 = sphi %s288, %s288
                $region69: #{tpu_custom_call.1} parent=58 // loop_header_branch
                  %328 = sbr.rel (%p326) target = $region73
                $region70: #{tpu_custom_call.1} parent=58 // loop_body
                  %v332 = vld [vmem:[%s330] sm:$0xf]
                  %333 = vst [vmem:[%s331] sm:$0xf] %v332
                  %v334 = vld [vmem:[%s330 + $0x8] sm:$0xf]
                  %335 = vst [vmem:[%s331 + $0x4] sm:$0xf] %v334
                $region71: #{tpu_custom_call.1} parent=58 // loop_footer
                  %s329 = sadd.s32 1, %s325
                $region72: #{tpu_custom_call.1} parent=58 // loop_footer_branch
                  %324 = sbr.rel target = $region68
                $region73: #{tpu_custom_call.1} parent=58 // loop_exit
                  _
              $region59: #{tpu_custom_call.1} parent=43 // pred_fallthru
                _
            $region44: #{tpu_custom_call.1} parent=39 // pred_fallthru
              _
            // Predicated region
            $region45: #{tpu_custom_call.1} parent=39 // pred_check
              _
            $region46: #{tpu_custom_call.1} parent=39 // pred_check_branch
              %299 = sbr.rel (0) target = $region48
            $region47: #{tpu_custom_call.1} parent=39 // pred_region
              loop: start=0, step=1, limit=1
              $region49: #{tpu_custom_call.1} parent=47 // loop_pre_header
                _
              $region50: #{tpu_custom_call.1} parent=47 // loop_header
                %s302 = sphi 0, %s306
                %p303 = scmp.ge.s32.totalorder %s302, 1
                %s307 = sphi %s293, %s293
                %s308 = sphi %s288, %s288
              $region51: #{tpu_custom_call.1} parent=47 // loop_header_branch
                %305 = sbr.rel (%p303) target = $region55
              $region52: #{tpu_custom_call.1} parent=47 // loop_body
                %v309 = vld [vmem:[%s307] sm:$0xf]
                %310 = vst [vmem:[%s308] sm:$0xf] %v309
                %v311 = vld [vmem:[%s307 + $0x8] sm:$0xf]
                %312 = vst [vmem:[%s308 + $0x4] sm:$0xf] %v311
              $region53: #{tpu_custom_call.1} parent=47 // loop_footer
                %s306 = sadd.s32 1, %s302
              $region54: #{tpu_custom_call.1} parent=47 // loop_footer_branch
                %301 = sbr.rel target = $region50
              $region55: #{tpu_custom_call.1} parent=47 // loop_exit
                _
            $region48: #{tpu_custom_call.1} parent=39 // pred_fallthru
              _
          $region40: #{tpu_custom_call.1} parent=35 // pred_fallthru
            _
          %336 = vnop
        $region36: #{tpu_custom_call.1} parent=31 // pred_fallthru
          _
        // Predicated region
        $region74: #{tpu_custom_call.1} parent=31 // pred_check
          %p337 = pneg %p154
        $region75: #{tpu_custom_call.1} parent=31 // pred_check_branch
          %339 = sbr.rel (%p337) target = $region77
        $region76: #{tpu_custom_call.1} parent=31 // pred_region
          %s340 = sand.u32 %s144, 1
          %s341 = sand.u32 %s144, 1
          %s342 = smul.addr %s341, 16
          %s343 = scalar_lea.vmem [#allocation6], %s342
          %s344 = smul.u32 2, %s21
          %s345 = smul.addr %s344, 2
          %s346 = sadd.s32 %s22, %s345
          %s347 = smul.addr %s346, 8
          %s348 = scalar_lea.vmem %s4, %s347
          // Predicated region
          $region78: #{tpu_custom_call.1} parent=76 // pred_check
            _
          $region79: #{tpu_custom_call.1} parent=76 // pred_check_branch
            %350 = sbr.rel (0) target = $region81
          $region80: #{tpu_custom_call.1} parent=76 // pred_region
            // Predicated region
            $region82: #{tpu_custom_call.1} parent=80 // pred_check
              _
            $region83: #{tpu_custom_call.1} parent=80 // pred_check_branch
              %352 = sbr.rel (0) target = $region85
            $region84: #{tpu_custom_call.1} parent=80 // pred_region
              // Predicated region
              $region97: #{tpu_custom_call.1} parent=84 // pred_check
                _
              $region98: #{tpu_custom_call.1} parent=84 // pred_check_branch
                %369 = sbr.rel (0) target = $region100
              $region99: #{tpu_custom_call.1} parent=84 // pred_region
                loop: start=0, step=1, limit=1
                $region101: #{tpu_custom_call.1} parent=99 // loop_pre_header
                  _
                $region102: #{tpu_custom_call.1} parent=99 // loop_header
                  %s371 = sphi 0, %s375
                  %p372 = scmp.ge.s32.totalorder %s371, 1
                  %s376 = sphi %s348, %s348
                  %s377 = sphi %s343, %s343
                $region103: #{tpu_custom_call.1} parent=99 // loop_header_branch
                  %374 = sbr.rel (%p372) target = $region107
                $region104: #{tpu_custom_call.1} parent=99 // loop_body
                  %v378 = vld [vmem:[%s376] sm:$0xff]
                  %379 = vst [vmem:[%s377] sm:$0xff] %v378
                  %v380 = vld [vmem:[%s376 + $0x10] sm:$0xff]
                  %381 = vst [vmem:[%s377 + $0x8] sm:$0xff] %v380
                $region105: #{tpu_custom_call.1} parent=99 // loop_footer
                  %s375 = sadd.s32 1, %s371
                $region106: #{tpu_custom_call.1} parent=99 // loop_footer_branch
                  %370 = sbr.rel target = $region102
                $region107: #{tpu_custom_call.1} parent=99 // loop_exit
                  _
              $region100: #{tpu_custom_call.1} parent=84 // pred_fallthru
                _
              // Predicated region
              $region108: #{tpu_custom_call.1} parent=84 // pred_check
                _
              $region109: #{tpu_custom_call.1} parent=84 // pred_check_branch
                %383 = sbr.rel target = $region111
              $region110: #{tpu_custom_call.1} parent=84 // pred_region
                _
              $region111: #{tpu_custom_call.1} parent=84 // pred_fallthru
                _
            $region85: #{tpu_custom_call.1} parent=80 // pred_fallthru
              _
            // Predicated region
            $region86: #{tpu_custom_call.1} parent=80 // pred_check
              _
            $region87: #{tpu_custom_call.1} parent=80 // pred_check_branch
              %354 = sbr.rel target = $region89
            $region88: #{tpu_custom_call.1} parent=80 // pred_region
              loop: start=0, step=1, limit=1
              $region90: #{tpu_custom_call.1} parent=88 // loop_pre_header
                _
              $region91: #{tpu_custom_call.1} parent=88 // loop_header
                %s357 = sphi 0, %s361
                %p358 = scmp.ge.s32.totalorder %s357, 1
                %s362 = sphi %s348, %s348
                %s363 = sphi %s343, %s343
              $region92: #{tpu_custom_call.1} parent=88 // loop_header_branch
                %360 = sbr.rel (%p358) target = $region96
              $region93: #{tpu_custom_call.1} parent=88 // loop_body
                %v364 = vld [vmem:[%s362] sm:$0xff]
                %365 = vst [vmem:[%s363] sm:$0xff] %v364
                %v366 = vld [vmem:[%s362 + $0x10] sm:$0xff]
                %367 = vst [vmem:[%s363 + $0x8] sm:$0xff] %v366
              $region94: #{tpu_custom_call.1} parent=88 // loop_footer
                %s361 = sadd.s32 1, %s357
              $region95: #{tpu_custom_call.1} parent=88 // loop_footer_branch
                %356 = sbr.rel target = $region91
              $region96: #{tpu_custom_call.1} parent=88 // loop_exit
                _
            $region89: #{tpu_custom_call.1} parent=80 // pred_fallthru
              _
          $region81: #{tpu_custom_call.1} parent=76 // pred_fallthru
            _
          %384 = vnop
        $region77: #{tpu_custom_call.1} parent=31 // pred_fallthru
          _
      $region32: #{tpu_custom_call.1} parent=5 // pred_fallthru
        _
      %p385 = scmp.le.s32.totalorder 1, %s14
      %p386 = scmp.lt.s32.totalorder %s14, 3
      %p387 = pnand %p385, %p386
      %p388 = pneg %p387
      // Predicated region
      $region112: #{tpu_custom_call.1} parent=5 // pred_check
        _
      $region113: #{tpu_custom_call.1} parent=5 // pred_check_branch
        %390 = sbr.rel (%p387) target = $region115
      $region114: #{tpu_custom_call.1} parent=5 // pred_region
        %s391 = ssub.s32 %s14, 1
        %s392 = sand.u32 %s119, 1
        %s393 = sand.u32 %s119, 1
        %s394 = smul.addr %s393, 8
        %s395 = scalar_lea.vmem [#allocation5], %s394
        // Predicated region
        $region116: #{tpu_custom_call.1} parent=114 // pred_check
          %p396 = pneg %p132
        $region117: #{tpu_custom_call.1} parent=114 // pred_check_branch
          %398 = sbr.rel (%p396) target = $region119
        $region118: #{tpu_custom_call.1} parent=114 // pred_region
          _
        $region119: #{tpu_custom_call.1} parent=114 // pred_fallthru
          _
        %s399 = sand.u32 %s147, 1
        %s400 = sand.u32 %s147, 1
        %s401 = smul.addr %s400, 16
        %s402 = scalar_lea.vmem [#allocation6], %s401
        // Predicated region
        $region120: #{tpu_custom_call.1} parent=114 // pred_check
          %p403 = pneg %p160
        $region121: #{tpu_custom_call.1} parent=114 // pred_check_branch
          %405 = sbr.rel (%p403) target = $region123
        $region122: #{tpu_custom_call.1} parent=114 // pred_region
          _
        $region123: #{tpu_custom_call.1} parent=114 // pred_fallthru
          _
        %s406 = smul.u32 2, %s23
        %p407 = scmp.lt.s32.totalorder %s406, 1
        %s408 = scalar_select %p407, %s406, 1
        %s409 = smul.addr %s408, 4
        %s410 = scalar_lea.vmem %s0, %s409
        %p411 = pneg %p52
        %p412 = pneg %p49
        %s413 = smul.u32 2, %s23
        %p414 = scmp.lt.s32.totalorder %s413, 1
        %s415 = scalar_select %p414, %s413, 1
        %s416 = smul.addr %s415, 8
        %s417 = scalar_lea.vmem %s1, %s416
        %p418 = pneg %p78
        %p419 = pneg %p75
        %s420 = smul.u32 2, %s23
        %p421 = scmp.lt.s32.totalorder %s420, 1
        %s422 = scalar_select %p421, %s420, 1
        %s423 = smul.addr %s422, 8
        %s424 = scalar_lea.vmem %s2, %s423
        %p425 = pneg %p104
        %p426 = pneg %p101
        %s427 = sand.u32 %s119, 1
        %s428 = sand.u32 %s119, 1
        %s429 = smul.addr %s428, 8
        %s430 = scalar_lea.vmem [#allocation5], %s429
        %p431 = pneg %p132
        %p432 = pneg %p129
        %s433 = sand.u32 %s147, 1
        %s434 = sand.u32 %s147, 1
        %s435 = smul.addr %s434, 16
        %s436 = scalar_lea.vmem [#allocation6], %s435
        %p437 = pneg %p160
        %p438 = pneg %p157
        %p439 = pneg %p181
        %p440 = pneg %p178
        %p441 = pneg %p207
        %p442 = pneg %p204
        %p443 = scmp.lt.s32.totalorder %s23, 0
        %s444 = scalar_select %p443, %s23, 0
        %s445 = smul.addr %s444, 2
        %s446 = scalar_lea.vmem %s6, %s445
        %p447 = pneg %p233
        %p448 = pneg %p230
        %p449 = scmp.lt.s32.totalorder %s23, 0
        %s450 = scalar_select %p449, %s23, 0
        %s451 = smul.addr %s450, 2
        %s452 = scalar_lea.vmem %s7, %s451
        %s453 = smul.u32 2, %s23
        %p454 = scmp.lt.s32.totalorder %s453, 1
        %s455 = scalar_select %p454, %s453, 1
        %s456 = smul.addr %s455, 4
        %s457 = scalar_lea.vmem %s0, %s456
        %s458 = smul.u32 2, %s23
        %s459 = smul.u32 2, %s23
        %p460 = scmp.lt.s32.totalorder %s459, 1
        %s461 = scalar_select %p460, %s459, 1
        %s462 = smul.addr %s461, 8
        %s463 = scalar_lea.vmem %s1, %s462
        %s464 = smul.u32 2, %s23
        %s465 = smul.u32 2, %s23
        %p466 = scmp.lt.s32.totalorder %s465, 1
        %s467 = scalar_select %p466, %s465, 1
        %s468 = smul.addr %s467, 8
        %s469 = scalar_lea.vmem %s2, %s468
        %s470 = smul.u32 2, %s23
        %s471 = smul.u32 2, %s23
        %s472 = smul.u32 2, %s23
        %p473 = scmp.lt.s32.totalorder %s23, 0
        %s474 = scalar_select %p473, %s23, 0
        %s475 = smul.addr %s474, 2
        %s476 = scalar_lea.vmem %s6, %s475
        %p477 = scmp.lt.s32.totalorder %s23, 0
        %s478 = scalar_select %p477, %s23, 0
        %s479 = smul.addr %s478, 2
        %s480 = scalar_lea.vmem %s7, %s479
        %v481 = vld [vmem:[%s5] sm:$0xff]
        %v482 = vld [vmem:[%s5 + $0x8] sm:$0xff]
        %v483 = vld [vmem:[%s5 + $0x10] sm:$0xff]
        %v484 = vld [vmem:[%s5 + $0x18] sm:$0xff]
        %v485 = vld [vmem:[%s5 + $0x20] sm:$0xff]
        %v486 = vld [vmem:[%s5 + $0x28] sm:$0xff]
        %v487 = vld [vmem:[%s5 + $0x30] sm:$0xff]
        %v488 = vld [vmem:[%s5 + $0x38] sm:$0xff]
        %v489 = vld [vmem:[%s5 + $0x40] sm:$0xff]
        %v490 = vld [vmem:[%s5 + $0x48] sm:$0xff]
        %v491 = vld [vmem:[%s5 + $0x50] sm:$0xff]
        %v492 = vld [vmem:[%s5 + $0x58] sm:$0xff]
        %v493 = vld [vmem:[%s5 + $0x60] sm:$0xff]
        %v494 = vld [vmem:[%s5 + $0x68] sm:$0xff]
        %v495 = vld [vmem:[%s5 + $0x70] sm:$0xff]
        %v496 = vld [vmem:[%s5 + $0x78] sm:$0xff]
        %p497 = scmp.eq.s32.totalorder %s24, 0
        // Predicated region
        $region124: #{tpu_custom_call.1} parent=114 // pred_check
          %p498 = pneg %p497
        $region125: #{tpu_custom_call.1} parent=114 // pred_check_branch
          %500 = sbr.rel (%p498) target = $region127
        $region126: #{tpu_custom_call.1} parent=114 // pred_region
          %v501 = vld [vmem:[%s457] sm:$0xf]
          %v502 = vld [vmem:[%s457 + $0x4] sm:$0xf]
          %v503 = vunpack.c.l.bf16 %v501
          %v504 = vunpack.c.l.bf16 %v502
          %v505 = vmul.f32 %v503, %v503
          %v506 = vmul.f32 %v504, %v504
          %vm507 = vcmask 261120
          %v508 = vsel %vm507, %v505, 0.0
          %509 = vadd.xlane.f32.xlu0 %v508
          %v510 = vpop.xlane.xlu0 %509
          %v511 = vsel %vm507, %v506, 0.0
          %512 = vadd.xlane.f32.xlu0 %v511
          %v513 = vpop.xlane.xlu0 %512
          %v514 = vmax.f32 %v510, 1e-30
          %v515 = vmax.f32 %v513, 1e-30
          %v516 = vrsqrt.pop %v514
          %v517 = vrsqrt.pop %v515
          %v518 = vmul.f32 %v510, %v516
          %v519 = vmul.f32 %v513, %v517
          %v520 = vtanh.pop %v518
          %v521 = vtanh.pop %v519
          %v522 = vmin.f32 %v520, 0.996
          %v523 = vmin.f32 %v521, 0.996
          %v524 = vmul.f32 %v522, %v516
          %v525 = vmul.f32 %v523, %v517
          %v526 = vmul.f32 %v524, %v503
          %v527 = vmul.f32 %v525, %v504
          %v528 = vld [vmem:[%s463] sm:$0xff]
          %v529 = vld [vmem:[%s463 + $0x8] sm:$0xff]
          %531 = vset.pattern.permute.xlu0 0
          %532 = vperm.xlu0 %531, %v528
          %v533 = vpop.permute.xlu0 %532
          %536 = vset.pattern.permute.xlu0 0
          %537 = vperm.xlu0 %536, %v529
          %v538 = vpop.permute.xlu0 %537
          %v540 = vmul.f32 %v526, %v533
          %v541 = vmul.f32 %v527, %v538
          %v542 = vsel %vm507, %v540, 0.0
          %v543 = vrot.slane %v542, 4
          %v544 = vadd.f32 %v542, %v543
          %v545 = vrot.slane %v544, 2
          %v546 = vadd.f32 %v544, %v545
          %v547 = vrot.slane %v546, 1
          %v548 = vadd.f32 %v546, %v547
          %v549 = vsel %vm507, %v541, 0.0
          %v550 = vrot.slane %v549, 4
          %v551 = vadd.f32 %v549, %v550
          %v552 = vrot.slane %v551, 2
          %v553 = vadd.f32 %v551, %v552
          %v554 = vrot.slane %v553, 1
          %v555 = vadd.f32 %v553, %v554
          %v556 = vld [vmem:[%s469] sm:$0xff]
          %v557 = vld [vmem:[%s469 + $0x8] sm:$0xff]
          %559 = vset.pattern.permute.xlu0 0
          %560 = vperm.xlu0 %559, %v556
          %v561 = vpop.permute.xlu0 %560
          %564 = vset.pattern.permute.xlu0 0
          %565 = vperm.xlu0 %564, %v557
          %v566 = vpop.permute.xlu0 %565
          %v568 = vmul.f32 %v526, %v561
          %v569 = vmul.f32 %v527, %v566
          %v570 = vsel %vm507, %v568, 0.0
          %v571 = vrot.slane %v570, 4
          %v572 = vadd.f32 %v570, %v571
          %v573 = vrot.slane %v572, 2
          %v574 = vadd.f32 %v572, %v573
          %v575 = vrot.slane %v574, 1
          %v576 = vadd.f32 %v574, %v575
          %v577 = vsel %vm507, %v569, 0.0
          %v578 = vrot.slane %v577, 4
          %v579 = vadd.f32 %v577, %v578
          %v580 = vrot.slane %v579, 2
          %v581 = vadd.f32 %v579, %v580
          %v582 = vrot.slane %v581, 1
          %v583 = vadd.f32 %v581, %v582
          %vm586 = vcmask 1041409
          %v587 = vsel %vm586, %v555, %v548
          %vm591 = vcmask 1043459
          %v592 = vsel %vm591, %v583, %v576
          %vm594 = vcmask 1041408
          %v595 = vsel %vm594, %v587, %v592
          %v596 = vmul.f32 %v595, %v595
          %vm597 = vcmask 257024
          %v598 = vsel %vm597, %v596, 0.0
          %599 = vadd.xlane.f32.xlu0 %v598
          %v600 = vpop.xlane.xlu0 %599
          %v601 = vmax.f32 %v600, 1e-30
          %v602 = vrsqrt.pop %v601
          %v603 = vmul.f32 %v600, %v602
          %v605 = vsel %vm507, %v595, 0
          %v608 = vsel %vm507, %v481, 0
          %v611 = vsel %vm507, %v482, 0
          %v614 = vsel %vm507, %v483, 0
          %v617 = vsel %vm507, %v484, 0
          %v620 = vsel %vm507, %v485, 0
          %v623 = vsel %vm507, %v486, 0
          %v626 = vsel %vm507, %v487, 0
          %v629 = vsel %vm507, %v488, 0
          %v632 = vsel %vm507, %v489, 0
          %v635 = vsel %vm507, %v490, 0
          %v638 = vsel %vm507, %v491, 0
          %v641 = vsel %vm507, %v492, 0
          %v644 = vsel %vm507, %v493, 0
          %v647 = vsel %vm507, %v494, 0
          %v650 = vsel %vm507, %v495, 0
          %v653 = vsel %vm507, %v496, 0
          %655 = vmatprep.subr.mxu0 0.0
          %656 = vmatpush1.xpose.msra.mxu0 %v608
          %657 = vmatprep.subr.mxu0 0.0
          %658 = vmatpush1.xpose.msra.mxu0 %v611
          %659 = vmatprep.subr.mxu0 0.0
          %660 = vmatpush1.xpose.msra.mxu0 %v614
          %661 = vmatprep.subr.mxu0 0.0
          %662 = vmatpush1.xpose.msra.mxu0 %v617
          %663 = vmatprep.subr.mxu0 0.0
          %664 = vmatpush1.xpose.msra.mxu0 %v620
          %665 = vmatprep.subr.mxu0 0.0
          %666 = vmatpush1.xpose.msra.mxu0 %v623
          %667 = vmatprep.subr.mxu0 0.0
          %668 = vmatpush1.xpose.msra.mxu0 %v626
          %669 = vmatprep.subr.mxu0 0.0
          %670 = vmatpush1.xpose.msra.mxu0 %v629
          %671 = vmatprep.subr.mxu0 0.0
          %672 = vmatpush1.xpose.msra.mxu0 %v632
          %673 = vmatprep.subr.mxu0 0.0
          %674 = vmatpush1.xpose.msra.mxu0 %v635
          %675 = vmatprep.subr.mxu0 0.0
          %676 = vmatpush1.xpose.msra.mxu0 %v638
          %677 = vmatprep.subr.mxu0 0.0
          %678 = vmatpush1.xpose.msra.mxu0 %v641
          %679 = vmatprep.subr.mxu0 0.0
          %680 = vmatpush1.xpose.msra.mxu0 %v644
          %681 = vmatprep.subr.mxu0 0.0
          %682 = vmatpush1.xpose.msra.mxu0 %v647
          %683 = vmatprep.subr.mxu0 0.0
          %684 = vmatpush1.xpose.msra.mxu0 %v650
          %685 = vmatprep.subr.mxu0 0.0
          %686 = vmatpush1.xpose.msra.mxu0 %v653
          %687 = vmatprep.subr.mxu0 0.0
          %688 = vmatpush1.xpose.msra.mxu0 0.0
          %689 = vmatprep.subr.mxu0 0.0
          %690 = vmatpush1.xpose.msra.mxu0 0.0
          %691 = vmatprep.subr.mxu0 0.0
          %692 = vmatpush1.xpose.msra.mxu0 0.0
          %693 = vmatprep.subr.mxu0 0.0
          %694 = vmatpush1.xpose.msra.mxu0 0.0
          %695 = vmatprep.subr.mxu0 0.0
          %696 = vmatpush1.xpose.msra.mxu0 0.0
          %697 = vmatprep.subr.mxu0 0.0
          %698 = vmatpush1.xpose.msra.mxu0 0.0
          %699 = vmatprep.subr.mxu0 0.0
          %700 = vmatpush1.xpose.msra.mxu0 0.0
          %701 = vmatprep.subr.mxu0 0.0
          %702 = vmatpush1.xpose.msra.mxu0 0.0
          %703 = vmatprep.subr.mxu0 0.0
          %704 = vmatpush1.xpose.msra.mxu0 0.0
          %705 = vmatprep.subr.mxu0 0.0
          %706 = vmatpush1.xpose.msra.mxu0 0.0
          %707 = vmatprep.subr.mxu0 0.0
          %708 = vmatpush1.xpose.msra.mxu0 0.0
          %709 = vmatprep.subr.mxu0 0.0
          %710 = vmatpush1.xpose.msra.mxu0 0.0
          %711 = vmatprep.subr.mxu0 0.0
          %712 = vmatpush1.xpose.msra.mxu0 0.0
          %713 = vmatprep.subr.mxu0 0.0
          %714 = vmatpush1.xpose.msra.mxu0 0.0
          %715 = vmatprep.subr.mxu0 0.0
          %716 = vmatpush1.xpose.msra.mxu0 0.0
          %717 = vmatprep.subr.mxu0 0.0
          %718 = vmatpush1.xpose.msra.mxu0 0.0
          %719 = vmatprep.mubr.f32.mxu0 0.0
          %720 = vmatmul.mubr.f32.gmra.mrb[0].mxu0 %v605
          %v721 = vpop.f32.mrb[0].mxu0
          %v722 = vadd.f32 0.0, %v721
          %v723 = vpop.f32.mrb[0].mxu0
          %724 = vdwg.mxu0
          %v725 = vmul.f32 %v722, %v722
          %vm726 = vcmask 1043456
          %v727 = vsel %vm726, %v725, 0.0
          %728 = vadd.xlane.f32.xlu0 %v727
          %v729 = vpop.xlane.xlu0 %728
          %v730 = vmax.f32 %v729, 1e-30
          %v731 = vrsqrt.pop %v730
          %v732 = vmul.f32 %v729, %v731
          %v733 = vmul.f32 %v732, %v602
          %v734 = vmax.f32 %v603, -0.9999999
          %v735 = vmin.f32 %v734, 0.9999999
          %v736 = vadd.f32 %v735, 1.0
          %v737 = vlog2.pop %v736
          %v738 = vmul.f32 %v737, 0.6931472
          %v739 = vsub.f32 1.0, %v735
          %v740 = vlog2.pop %v739
          %v741 = vmul.f32 %v740, 0.6931472
          %v742 = vsub.f32 %v738, %v741
          %v743 = vmul.f32 %v742, 0.5
          %v744 = vmul.f32 %v733, %v743
          %v745 = vtanh.pop %v744
          %v746 = vmul.f32 %v722, %v731
          %v747 = vmul.f32 %v745, %v746
          %v748 = vand.u32 2147483647, %v722
          %v749 = vsel %vm726, %v748, 0.0
          %750 = vadd.xlane.f32.xlu0 %v749
          %v751 = vpop.xlane.xlu0 %750
          %vm752 = vcmp.eq.f32.partialorder %v751, 0.0
          %v753 = vsel %vm752, 1, 0
          %vm754 = vcmp.eq.s32.totalorder %v753, 1
          %v755 = vsel %vm754, 0.0, %v747
          %v756 = vmul.f32 %v755, %v755
          %v757 = vsel %vm726, %v756, 0.0
          %758 = vadd.xlane.f32.xlu0 %v757
          %v759 = vpop.xlane.xlu0 %758
          %v760 = vmax.f32 %v759, 1e-30
          %v761 = vrsqrt.pop %v760
          %v762 = vmul.f32 %v759, %v761
          %vm763 = vcmp.gt.f32.partialorder %v762, 0.996
          %v764 = vmul.f32 %v761, 0.996
          %v765 = vmul.f32 %v755, %v764
          %v766 = vsel %vm763, 1, 0
          %vm767 = vcmp.eq.s32.totalorder %v766, 1
          %v768 = vsel %vm767, %v765, %v755
          %v769 = vmul.f32 %v768, %v768
          %v770 = vsel %vm594, %v769, 0.0
          %771 = vadd.xlane.f32.xlu0 %v770
          %v772 = vpop.xlane.xlu0 %771
          %vm773 = vcmask 1043458
          %v774 = vsel %vm773, %v769, 0.0
          %775 = vadd.xlane.f32.xlu0 %v774
          %v776 = vpop.xlane.xlu0 %775
          %v778 = vrot.slane %v768, 2
          %v780 = vsub.f32 %v768, %v778
          %v781 = vmul.f32 %v780, %v780
          %v782 = vsel %vm594, %v781, 0.0
          %783 = vadd.xlane.f32.xlu0 %v782
          %v784 = vpop.xlane.xlu0 %783
          %v785 = vrsqrt.pop %v784
          %v786 = vmul.f32 %v784, %v785
          %vm787 = vcmp.eq.f32.partialorder %v784, inf
          %v788 = vsel %vm787, %v784, %v786
          %vm789 = vcmp.eq.f32.partialorder %v784, 0.0
          %v790 = vand.u32 %v784, 2147483648
          %v791 = vsel %vm789, %v790, %v788
          %v792 = vmul.f32 %v768, %v778
          %v793 = vsel %vm594, %v792, 0.0
          %794 = vadd.xlane.f32.xlu0 %v793
          %v795 = vpop.xlane.xlu0 %794
          %v797 = vrot.slane %v776, 2
          %v799 = vmul.f32 %v772, %v797
          %v800 = vadd.f32 %v799, 1.0
          %v801 = vmul.f32 %v795, 2.0
          %v802 = vsub.f32 %v800, %v801
          %v803 = vmax.f32 %v802, 0.0
          %v804 = vrsqrt.pop %v776
          %v805 = vmul.f32 %v776, %v804
          %vm806 = vcmp.eq.f32.partialorder %v776, inf
          %v807 = vsel %vm806, %v776, %v805
          %vm808 = vcmp.eq.f32.partialorder %v776, 0.0
          %v809 = vand.u32 %v776, 2147483648
          %v810 = vsel %vm808, %v809, %v807
          %v812 = vrot.slane %v791, 6
          %v814 = vmul.f32 %v810, %v812
          %v815 = vrsqrt.pop %v803
          %v816 = vmul.f32 %v803, %v815
          %vm817 = vcmp.eq.f32.partialorder %v803, inf
          %v818 = vsel %vm817, %v803, %v816
          %vm819 = vcmp.eq.f32.partialorder %v803, 0.0
          %v820 = vand.u32 %v803, 2147483648
          %v821 = vsel %vm819, %v820, %v818
          %v823 = vrot.slane %v821, 6
          %v825 = vmul.f32 %v814, %v823
          %v826 = vadd.f32 %v776, 1.0
          %v828 = vrot.slane %v826, 2
          %v830 = vmul.f32 %v795, %v828
          %v831 = vadd.f32 %v772, 1.0
          %v833 = vrot.slane %v831, 6
          %v835 = vmul.f32 %v776, %v833
          %v837 = vrot.slane %v835, 2
          %v839 = vsub.f32 %v830, %v837
          %v840 = vmax.f32 %v825, 1e-15
          %v842 = vrot.slane %v840, 2
          %v844 = vrcp.pop %v842
          %v845 = vmul.f32 %v839, %v844
          %v846 = vmax.f32 %v845, -1.0
          %v847 = vmin.f32 %v846, 1.0
          %vm848 = vcmask 1024
          %849 = vst.msk [vmem:[%s476] sm:$0x3] %vm848, %v847
          %850 = vst [vmem:[#allocation2] sm:$0x3] %v768
          %v851 = vsub.f32 0.0, %v768
          %v852 = vmul.f32 %v851, %v851
          %v853 = vsel %vm594, %v852, 0.0
          %854 = vadd.xlane.f32.xlu0 %v853
          %v855 = vpop.xlane.xlu0 %854
          %v856 = vmul.f32 %v851, %v778
          %v857 = vsel %vm594, %v856, 0.0
          %858 = vadd.xlane.f32.xlu0 %v857
          %v859 = vpop.xlane.xlu0 %858
          %v860 = vmul.f32 %v859, 2.0
          %v861 = vadd.f32 %v860, 1.0
          %v862 = vadd.f32 %v861, %v797
          %864 = vset.pattern.permute.xlu0 0
          %865 = vperm.xlu0 %864, %v862
          %v866 = vpop.permute.xlu0 %865
          %v868 = vmul.f32 %v866, %v851
          %v869 = vsub.f32 1.0, %v855
          %v870 = vmul.f32 %v869, %v778
          %v871 = vadd.f32 %v868, %v870
          %v872 = vmul.f32 %v855, %v797
          %v873 = vadd.f32 %v861, %v872
          %v874 = vmax.f32 %v873, 1e-15
          %876 = vset.pattern.permute.xlu0 0
          %877 = vperm.xlu0 %876, %v874
          %v878 = vpop.permute.xlu0 %877
          %v880 = vrcp.pop %v878
          %v881 = vmul.f32 %v871, %v880
          %v882 = vmul.f32 %v881, %v881
          %v883 = vsel %vm594, %v882, 0.0
          %884 = vadd.xlane.f32.xlu0 %v883
          %v885 = vpop.xlane.xlu0 %884
          %v886 = vrsqrt.pop %v885
          %v887 = vmul.f32 %v885, %v886
          %vm888 = vcmp.eq.f32.partialorder %v885, inf
          %v889 = vsel %vm888, %v885, %v887
          %vm890 = vcmp.eq.f32.partialorder %v885, 0.0
          %v891 = vand.u32 %v885, 2147483648
          %v892 = vsel %vm890, %v891, %v889
          %v893 = vmax.f32 %v892, -0.9999999
          %v894 = vmin.f32 %v893, 0.9999999
          %v895 = vadd.f32 %v894, 1.0
          %v896 = vlog2.pop %v895
          %v897 = vmul.f32 %v896, 0.6931472
          %v898 = vsub.f32 1.0, %v894
          %v899 = vlog2.pop %v898
          %v900 = vmul.f32 %v899, 0.6931472
          %v901 = vsub.f32 %v897, %v900
          %v902 = vmul.f32 %v901, 0.5
          %v903 = vmul.f32 %v902, 2.0
          %904 = vst.msk [vmem:[#allocation3] sm:$0x3] %vm848, %v903
          %905 = vst.msk [vmem:[#allocation4] sm:$0x3] %vm848, 0.0
        $region127: #{tpu_custom_call.1} parent=114 // pred_fallthru
          _
        %v906 = vld [vmem:[%s395] sm:$0xf]
        %v907 = vld [vmem:[%s395 + $0x4] sm:$0xf]
        %v908 = vunpack.c.l.bf16 %v906
        %v909 = vunpack.c.l.bf16 %v907
        %v910 = vmul.f32 %v908, %v908
        %v911 = vmul.f32 %v909, %v909
        %vm912 = vcmask 261120
        %v913 = vsel %vm912, %v910, 0.0
        %914 = vadd.xlane.f32.xlu0 %v913
        %v915 = vpop.xlane.xlu0 %914
        %v916 = vsel %vm912, %v911, 0.0
        %917 = vadd.xlane.f32.xlu0 %v916
        %v918 = vpop.xlane.xlu0 %917
        %v919 = vmax.f32 %v915, 1e-30
        %v920 = vmax.f32 %v918, 1e-30
        %v921 = vrsqrt.pop %v919
        %v922 = vrsqrt.pop %v920
        %v923 = vmul.f32 %v915, %v921
        %v924 = vmul.f32 %v918, %v922
        %v925 = vtanh.pop %v923
        %v926 = vtanh.pop %v924
        %v927 = vmin.f32 %v925, 0.996
        %v928 = vmin.f32 %v926, 0.996
        %v929 = vmul.f32 %v927, %v921
        %v930 = vmul.f32 %v928, %v922
        %v931 = vmul.f32 %v929, %v908
        %v932 = vmul.f32 %v930, %v909
        %v933 = vld [vmem:[%s402] sm:$0xff]
        %v934 = vld [vmem:[%s402 + $0x8] sm:$0xff]
        %936 = vset.pattern.permute.xlu0 0
        %937 = vperm.xlu0 %936, %v933
        %v938 = vpop.permute.xlu0 %937
        %941 = vset.pattern.permute.xlu0 0
        %942 = vperm.xlu0 %941, %v934
        %v943 = vpop.permute.xlu0 %942
        %v945 = vmul.f32 %v931, %v938
        %v946 = vmul.f32 %v932, %v943
        %v947 = vsel %vm912, %v945, 0.0
        %v948 = vrot.slane %v947, 4
        %v949 = vadd.f32 %v947, %v948
        %v950 = vrot.slane %v949, 2
        %v951 = vadd.f32 %v949, %v950
        %v952 = vrot.slane %v951, 1
        %v953 = vadd.f32 %v951, %v952
        %v954 = vsel %vm912, %v946, 0.0
        %v955 = vrot.slane %v954, 4
        %v956 = vadd.f32 %v954, %v955
        %v957 = vrot.slane %v956, 2
        %v958 = vadd.f32 %v956, %v957
        %v959 = vrot.slane %v958, 1
        %v960 = vadd.f32 %v958, %v959
        %v961 = vmul.f32 %v953, %v953
        %v962 = vmul.f32 %v960, %v960
        %vm965 = vcmask 1041409
        %v966 = vsel %vm965, %v962, %v961
        %vm968 = vcmask 254976
        %v969 = vsel %vm968, %v966, 0.0
        %970 = vadd.xlane.f32.xlu0 %v969
        %v971 = vpop.xlane.xlu0 %970
        %v972 = vmax.f32 %v971, 1e-30
        %v973 = vrsqrt.pop %v972
        %v974 = vmul.f32 %v971, %v973
        %v977 = vsel %vm965, %v960, %v953
        %v978 = vsel %vm912, %v977, 0
        %v981 = vsel %vm912, %v481, 0
        %v984 = vsel %vm912, %v482, 0
        %v987 = vsel %vm912, %v483, 0
        %v990 = vsel %vm912, %v484, 0
        %v993 = vsel %vm912, %v485, 0
        %v996 = vsel %vm912, %v486, 0
        %v999 = vsel %vm912, %v487, 0
        %v1002 = vsel %vm912, %v488, 0
        %v1005 = vsel %vm912, %v489, 0
        %v1008 = vsel %vm912, %v490, 0
        %v1011 = vsel %vm912, %v491, 0
        %v1014 = vsel %vm912, %v492, 0
        %v1017 = vsel %vm912, %v493, 0
        %v1020 = vsel %vm912, %v494, 0
        %v1023 = vsel %vm912, %v495, 0
        %v1026 = vsel %vm912, %v496, 0
        %1028 = vmatprep.subr.mxu0 0.0
        %1029 = vmatpush1.xpose.msra.mxu0 %v981
        %1030 = vmatprep.subr.mxu0 0.0
        %1031 = vmatpush1.xpose.msra.mxu0 %v984
        %1032 = vmatprep.subr.mxu0 0.0
        %1033 = vmatpush1.xpose.msra.mxu0 %v987
        %1034 = vmatprep.subr.mxu0 0.0
        %1035 = vmatpush1.xpose.msra.mxu0 %v990
        %1036 = vmatprep.subr.mxu0 0.0
        %1037 = vmatpush1.xpose.msra.mxu0 %v993
        %1038 = vmatprep.subr.mxu0 0.0
        %1039 = vmatpush1.xpose.msra.mxu0 %v996
        %1040 = vmatprep.subr.mxu0 0.0
        %1041 = vmatpush1.xpose.msra.mxu0 %v999
        %1042 = vmatprep.subr.mxu0 0.0
        %1043 = vmatpush1.xpose.msra.mxu0 %v1002
        %1044 = vmatprep.subr.mxu0 0.0
        %1045 = vmatpush1.xpose.msra.mxu0 %v1005
        %1046 = vmatprep.subr.mxu0 0.0
        %1047 = vmatpush1.xpose.msra.mxu0 %v1008
        %1048 = vmatprep.subr.mxu0 0.0
        %1049 = vmatpush1.xpose.msra.mxu0 %v1011
        %1050 = vmatprep.subr.mxu0 0.0
        %1051 = vmatpush1.xpose.msra.mxu0 %v1014
        %1052 = vmatprep.subr.mxu0 0.0
        %1053 = vmatpush1.xpose.msra.mxu0 %v1017
        %1054 = vmatprep.subr.mxu0 0.0
        %1055 = vmatpush1.xpose.msra.mxu0 %v1020
        %1056 = vmatprep.subr.mxu0 0.0
        %1057 = vmatpush1.xpose.msra.mxu0 %v1023
        %1058 = vmatprep.subr.mxu0 0.0
        %1059 = vmatpush1.xpose.msra.mxu0 %v1026
        %1060 = vmatprep.subr.mxu0 0.0
        %1061 = vmatpush1.xpose.msra.mxu0 0.0
        %1062 = vmatprep.subr.mxu0 0.0
        %1063 = vmatpush1.xpose.msra.mxu0 0.0
        %1064 = vmatprep.subr.mxu0 0.0
        %1065 = vmatpush1.xpose.msra.mxu0 0.0
        %1066 = vmatprep.subr.mxu0 0.0
        %1067 = vmatpush1.xpose.msra.mxu0 0.0
        %1068 = vmatprep.subr.mxu0 0.0
        %1069 = vmatpush1.xpose.msra.mxu0 0.0
        %1070 = vmatprep.subr.mxu0 0.0
        %1071 = vmatpush1.xpose.msra.mxu0 0.0
        %1072 = vmatprep.subr.mxu0 0.0
        %1073 = vmatpush1.xpose.msra.mxu0 0.0
        %1074 = vmatprep.subr.mxu0 0.0
        %1075 = vmatpush1.xpose.msra.mxu0 0.0
        %1076 = vmatprep.subr.mxu0 0.0
        %1077 = vmatpush1.xpose.msra.mxu0 0.0
        %1078 = vmatprep.subr.mxu0 0.0
        %1079 = vmatpush1.xpose.msra.mxu0 0.0
        %1080 = vmatprep.subr.mxu0 0.0
        %1081 = vmatpush1.xpose.msra.mxu0 0.0
        %1082 = vmatprep.subr.mxu0 0.0
        %1083 = vmatpush1.xpose.msra.mxu0 0.0
        %1084 = vmatprep.subr.mxu0 0.0
        %1085 = vmatpush1.xpose.msra.mxu0 0.0
        %1086 = vmatprep.subr.mxu0 0.0
        %1087 = vmatpush1.xpose.msra.mxu0 0.0
        %1088 = vmatprep.subr.mxu0 0.0
        %1089 = vmatpush1.xpose.msra.mxu0 0.0
        %1090 = vmatprep.subr.mxu0 0.0
        %1091 = vmatpush1.xpose.msra.mxu0 0.0
        %1092 = vmatprep.mubr.f32.mxu0 0.0
        %1093 = vmatmul.mubr.f32.gmra.mrb[0].mxu0 %v978
        %v1094 = vpop.f32.mrb[0].mxu0
        %v1095 = vadd.f32 0.0, %v1094
        %v1096 = vpop.f32.mrb[0].mxu0
        %1097 = vdwg.mxu0
        %v1098 = vmul.f32 %v1095, %v1095
        %vm1099 = vcmask 1041408
        %v1100 = vsel %vm1099, %v1098, 0.0
        %1101 = vadd.xlane.f32.xlu0 %v1100
        %v1102 = vpop.xlane.xlu0 %1101
        %v1103 = vmax.f32 %v1102, 1e-30
        %v1104 = vrsqrt.pop %v1103
        %v1105 = vmul.f32 %v1102, %v1104
        %v1106 = vmul.f32 %v1105, %v973
        %v1107 = vmax.f32 %v974, -0.9999999
        %v1108 = vmin.f32 %v1107, 0.9999999
        %v1109 = vadd.f32 %v1108, 1.0
        %v1110 = vlog2.pop %v1109
        %v1111 = vmul.f32 %v1110, 0.6931472
        %v1112 = vsub.f32 1.0, %v1108
        %v1113 = vlog2.pop %v1112
        %v1114 = vmul.f32 %v1113, 0.6931472
        %v1115 = vsub.f32 %v1111, %v1114
        %v1116 = vmul.f32 %v1115, 0.5
        %v1117 = vmul.f32 %v1106, %v1116
        %v1118 = vtanh.pop %v1117
        %v1119 = vmul.f32 %v1095, %v1104
        %v1120 = vmul.f32 %v1118, %v1119
        %v1121 = vand.u32 2147483647, %v1095
        %v1122 = vsel %vm1099, %v1121, 0.0
        %1123 = vadd.xlane.f32.xlu0 %v1122
        %v1124 = vpop.xlane.xlu0 %1123
        %vm1125 = vcmp.eq.f32.partialorder %v1124, 0.0
        %v1126 = vsel %vm1125, 1, 0
        %vm1127 = vcmp.eq.s32.totalorder %v1126, 1
        %v1128 = vsel %vm1127, 0.0, %v1120
        %v1129 = vmul.f32 %v1128, %v1128
        %v1130 = vsel %vm1099, %v1129, 0.0
        %1131 = vadd.xlane.f32.xlu0 %v1130
        %v1132 = vpop.xlane.xlu0 %1131
        %v1133 = vmax.f32 %v1132, 1e-30
        %v1134 = vrsqrt.pop %v1133
        %v1135 = vmul.f32 %v1132, %v1134
        %vm1136 = vcmp.gt.f32.partialorder %v1135, 0.996
        %v1137 = vmul.f32 %v1134, 0.996
        %v1138 = vmul.f32 %v1128, %v1137
        %v1139 = vsel %vm1136, 1, 0
        %vm1140 = vcmp.eq.s32.totalorder %v1139, 1
        %v1141 = vsel %vm1140, %v1138, %v1128
        %v1142 = vld [vmem:[#allocation4] sm:$0x3]
        %v1143 = vld [vmem:[#allocation2] sm:$0x3]
        %v1144 = vsub.f32 0.0, %v1143
        %v1145 = vmul.f32 %v1144, %v1144
        %v1146 = vsel %vm1099, %v1145, 0.0
        %1147 = vadd.xlane.f32.xlu0 %v1146
        %v1148 = vpop.xlane.xlu0 %1147
        %v1149 = vmul.f32 %v1141, %v1141
        %v1150 = vsel %vm1099, %v1149, 0.0
        %1151 = vadd.xlane.f32.xlu0 %v1150
        %v1152 = vpop.xlane.xlu0 %1151
        %v1153 = vmul.f32 %v1144, %v1141
        %v1154 = vsel %vm1099, %v1153, 0.0
        %1155 = vadd.xlane.f32.xlu0 %v1154
        %v1156 = vpop.xlane.xlu0 %1155
        %v1157 = vmul.f32 %v1156, 2.0
        %v1158 = vadd.f32 %v1157, 1.0
        %v1159 = vadd.f32 %v1158, %v1152
        %v1160 = vmul.f32 %v1159, %v1144
        %v1161 = vsub.f32 1.0, %v1148
        %v1162 = vmul.f32 %v1161, %v1141
        %v1163 = vadd.f32 %v1160, %v1162
        %v1164 = vmul.f32 %v1148, %v1152
        %v1165 = vadd.f32 %v1158, %v1164
        %v1166 = vmax.f32 %v1165, 1e-15
        %v1167 = vrcp.pop %v1166
        %v1168 = vmul.f32 %v1163, %v1167
        %v1169 = vmul.f32 %v1168, %v1168
        %v1170 = vsel %vm1099, %v1169, 0.0
        %1171 = vadd.xlane.f32.xlu0 %v1170
        %v1172 = vpop.xlane.xlu0 %1171
        %v1173 = vrsqrt.pop %v1172
        %v1174 = vmul.f32 %v1172, %v1173
        %vm1175 = vcmp.eq.f32.partialorder %v1172, inf
        %v1176 = vsel %vm1175, %v1172, %v1174
        %vm1177 = vcmp.eq.f32.partialorder %v1172, 0.0
        %v1178 = vand.u32 %v1172, 2147483648
        %v1179 = vsel %vm1177, %v1178, %v1176
        %v1180 = vmax.f32 %v1179, -0.9999999
        %v1181 = vmin.f32 %v1180, 0.9999999
        %v1182 = vadd.f32 %v1181, 1.0
        %v1183 = vlog2.pop %v1182
        %v1184 = vmul.f32 %v1183, 0.6931472
        %v1185 = vsub.f32 1.0, %v1181
        %v1186 = vlog2.pop %v1185
        %v1187 = vmul.f32 %v1186, 0.6931472
        %v1188 = vsub.f32 %v1184, %v1187
        %v1189 = vmul.f32 %v1188, 0.5
        %v1190 = vmul.f32 %v1189, 2.0
        %v1191 = vsub.f32 0.0, %v1190
        %v1192 = vmul.f32 %v1191, 1.442695
        %v1193 = vpow.pop %v1192
        %v1194 = vadd.f32 %v1142, %v1193
        %vm1195 = vcmask 1024
        %1196 = vst.msk [vmem:[#allocation4] sm:$0x3] %vm1195, %v1194
        %p1197 = scmp.eq.s32.totalorder %s24, 1
        // Predicated region
        $region128: #{tpu_custom_call.1} parent=114 // pred_check
          %p1198 = pneg %p1197
        $region129: #{tpu_custom_call.1} parent=114 // pred_check_branch
          %1200 = sbr.rel (%p1198) target = $region131
        $region130: #{tpu_custom_call.1} parent=114 // pred_region
          %v1201 = vld [vmem:[#allocation3] sm:$0x3]
          %v1202 = vld [vmem:[#allocation4] sm:$0x3]
          %v1203 = vsub.f32 0.0, %v1201
          %v1204 = vmul.f32 %v1203, 1.442695
          %v1205 = vpow.pop %v1204
          %v1206 = vadd.f32 %v1202, %v1205
          %v1207 = vlog2.pop %v1206
          %v1208 = vmul.f32 %v1207, 0.6931472
          %v1209 = vadd.f32 %v1201, %v1208
          %1210 = vst.msk [vmem:[%s480] sm:$0x3] %vm1195, %v1209
        $region131: #{tpu_custom_call.1} parent=114 // pred_fallthru
          _
        %p1211 = scmp.lt.s32.totalorder %s23, 0
        %s1212 = scalar_select %p1211, %s23, 0
        %s1213 = smul.addr %s1212, 2
        %s1214 = scalar_lea.vmem %s6, %s1213
        %p1215 = scmp.lt.s32.totalorder %s23, 0
        %s1216 = scalar_select %p1215, %s23, 0
        %s1217 = smul.addr %s1216, 2
        %s1218 = scalar_lea.vmem %s7, %s1217
        // Predicated region
        $region132: #{tpu_custom_call.1} parent=114 // pred_check
          %p1219 = pneg %p204
        $region133: #{tpu_custom_call.1} parent=114 // pred_check_branch
          %1221 = sbr.rel (%p1219) target = $region135
        $region134: #{tpu_custom_call.1} parent=114 // pred_region
          _
        $region135: #{tpu_custom_call.1} parent=114 // pred_fallthru
          _
        // Predicated region
        $region136: #{tpu_custom_call.1} parent=114 // pred_check
          %p1222 = pneg %p230
        $region137: #{tpu_custom_call.1} parent=114 // pred_check_branch
          %1224 = sbr.rel (%p1222) target = $region139
        $region138: #{tpu_custom_call.1} parent=114 // pred_region
          _
        $region139: #{tpu_custom_call.1} parent=114 // pred_fallthru
          _
        // Predicated region
        $region140: #{tpu_custom_call.1} parent=114 // pred_check
          %p1225 = pneg %p204
        $region141: #{tpu_custom_call.1} parent=114 // pred_check_branch
          %1227 = sbr.rel (%p1225) target = $region143
        $region142: #{tpu_custom_call.1} parent=114 // pred_region
          %p1228 = scmp.lt.s32.totalorder %s23, 0
          %s1229 = scalar_select %p1228, %s23, 0
          %s1230 = smul.addr %s1229, 2
          %s1231 = scalar_lea.vmem %s6, %s1230
        $region143: #{tpu_custom_call.1} parent=114 // pred_fallthru
          _
        // Predicated region
        $region144: #{tpu_custom_call.1} parent=114 // pred_check
          %p1232 = pneg %p230
        $region145: #{tpu_custom_call.1} parent=114 // pred_check_branch
          %1234 = sbr.rel (%p1232) target = $region147
        $region146: #{tpu_custom_call.1} parent=114 // pred_region
          %p1235 = scmp.lt.s32.totalorder %s23, 0
          %s1236 = scalar_select %p1235, %s23, 0
          %s1237 = smul.addr %s1236, 2
          %s1238 = scalar_lea.vmem %s7, %s1237
        $region147: #{tpu_custom_call.1} parent=114 // pred_fallthru
          _
      $region115: #{tpu_custom_call.1} parent=5 // pred_fallthru
        _
      %p1239 = scmp.le.s32.totalorder 2, %s14
      // Predicated region
      $region148: #{tpu_custom_call.1} parent=5 // pred_check
        %p1240 = pneg %p1239
      $region149: #{tpu_custom_call.1} parent=5 // pred_check_branch
        %1242 = sbr.rel (%p1240) target = $region151
      $region150: #{tpu_custom_call.1} parent=5 // pred_region
        %s1243 = ssub.s32 %s14, 2
      $region151: #{tpu_custom_call.1} parent=5 // pred_fallthru
        _
    $region6: #{tpu_custom_call.1} parent=1 // loop_footer
      %s18 = sadd.s32 1, %s14
    $region7: #{tpu_custom_call.1} parent=1 // loop_footer_branch
      %13 = sbr.rel target = $region3
    $region8: #{tpu_custom_call.1} parent=1 // loop_exit
      _

</llo_original>
